<compile_context>
chip_gen: v5e
topology: v5e:2x2
jax: 0.10.0
libtpu: 0.0.40
codegen_flags: <defaults>
</compile_context>

<pallas_src>
import functools

import jax
import jax.numpy as jnp
from jax.experimental import pallas as pl
from jax.experimental.pallas import tpu as pltpu

LN_EPS = 1e-5  # nn.LayerNorm default
_MIB = 1 << 20


# ----------------------------- VMEM budgeting helpers --------------------------

def _vmem_cap():
    try:
        return int(pltpu.get_tpu_info().vmem_capacity_bytes)
    except Exception:
        return 64 * _MIB  # conservative default (v7x per-TensorCore VMEM)


def _vmem_limit(estimate_bytes):
    # Explicit scoped-VMEM request: generous floor, capped below physical capacity.
    cap = _vmem_cap()
    return int(min(int(0.9 * cap), max(32 * _MIB, int(1.25 * estimate_bytes))))


def _choose_rows(m, per_row_bytes, resident_bytes):
    """Largest row tile that (a) divides the (sublane-rounded) row count -> no
    jnp.pad copy, and (b) keeps the rough VMEM estimate under budget."""
    budget = int(0.7 * _vmem_cap())
    mp = int(pl.cdiv(m, 8) * 8)          # sublane granularity
    tm = 8
    for t in (16, 32, 64, 128, 256, 512):
        if mp % t == 0 and resident_bytes + t * per_row_bytes <= budget:
            tm = t
    return tm, mp


# ----------------------------- in-kernel helpers ------------------------------

def _erf_poly(x):
    # Abramowitz & Stegun 7.1.26 rational approximation of erf (max abs err ~1.5e-7).
    # Divide goes to the EUP via pl.reciprocal; exp also lands on the EUP.
    p = 0.3275911
    a1, a2, a3, a4, a5 = (0.254829592, -0.284496736, 1.421413741,
                          -1.453152027, 1.061405429)
    sgn = jnp.where(x >= 0.0, 1.0, -1.0)
    ax = jnp.abs(x)
    t = pl.reciprocal(1.0 + p * ax, approx=True)
    poly = t * (a1 + t * (a2 + t * (a3 + t * (a4 + t * a5))))
    return sgn * (1.0 - poly * jnp.exp(-ax * ax))


def _gelu_exact(x):
    # Matches torch.nn.GELU() (erf-based, not tanh approx).
    return 0.5 * x * (1.0 + _erf_poly(x * 0.7071067811865476))


def _layernorm(x, gamma, beta):
    mu = jnp.mean(x, axis=-1, keepdims=True)
    xc = x - mu
    var = jnp.mean(xc * xc, axis=-1, keepdims=True)
    return xc * jax.lax.rsqrt(var + LN_EPS) * gamma + beta


# --------------------------------- kernels -------------------------------------

def _ln_qkv_kernel(x_ref, g_ref, b_ref, w_ref, o_ref):
    # LayerNorm1 (f32) + qkv projection (bf16 MXU, f32 acc), stored bf16. qkv_bias=False.
    xn = _layernorm(x_ref[...], g_ref[...], b_ref[...])
    o_ref[...] = jnp.dot(xn.astype(w_ref.dtype), w_ref[...],
                         preferred_element_type=jnp.float32).astype(o_ref.dtype)


def _mha_kernel(qkv_ref, o_ref, *, num_heads, head_dim, scale):
    # One batch element, all heads. qkv_ref: (N, 3D) bf16 laid out [q | k | v],
    # each D = H*hd wide, head-major. Output (N, D) bf16 in (N, H, hd) lane order,
    # so the wrapper-side head merge is a free reshape.
    d = num_heads * head_dim
    ctx_parts = []
    for h in range(num_heads):               # static unroll; offsets are static slices
        lo = h * head_dim
        q = qkv_ref[:, lo:lo + head_dim]                      # (N, hd) bf16
        k = qkv_ref[:, d + lo:d + lo + head_dim]              # (N, hd) bf16
        v = qkv_ref[:, 2 * d + lo:2 * d + lo + head_dim]      # (N, hd) bf16
        # scores = q @ k^T (contract last dims; no explicit transpose materialized)
        s = jax.lax.dot_general(q, k, (((1,), (1,)), ((), ())),
                                preferred_element_type=jnp.float32) * scale
        m = jnp.max(s, axis=-1, keepdims=True)
        p = jnp.exp(s - m)                                    # unnormalized, <= 1
        l = jnp.sum(p, axis=-1, keepdims=True)
        ctx = jnp.dot(p.astype(v.dtype), v, preferred_element_type=jnp.float32)
        # Normalize AFTER p@v: (N, hd) scale on the EUP instead of an (N, N) divide.
        ctx = ctx * pl.reciprocal(l, approx=True)
        ctx_parts.append(ctx.astype(o_ref.dtype))
    o_ref[...] = jnp.concatenate(ctx_parts, axis=-1)          # lane-dense (N, D) store


def _proj_mlp_kernel(x_ref, c_ref, wp_ref, bp_ref, g_ref, b_ref,
                     w1_ref, b1_ref, w2_ref, b2_ref, o_ref):
    # attn proj + residual + LayerNorm2 + fc1 + GELU + fc2 + residual, fused.
    x = x_ref[...]
    attn_out = jnp.dot(c_ref[...], wp_ref[...],
                       preferred_element_type=jnp.float32) + bp_ref[...]
    h = x + attn_out
    z = _layernorm(h, g_ref[...], b_ref[...])
    u = jnp.dot(z.astype(w1_ref.dtype), w1_ref[...],
                preferred_element_type=jnp.float32) + b1_ref[...]
    u = _gelu_exact(u)
    y = jnp.dot(u.astype(w2_ref.dtype), w2_ref[...],
                preferred_element_type=jnp.float32) + b2_ref[...]
    o_ref[...] = (h + y).astype(o_ref.dtype)


# ------------------------------ pallas wrappers --------------------------------

def _ln_qkv(x2, gamma, beta, w_qkv):
    m, d = x2.shape
    d3 = w_qkv.shape[1]
    per_row = 16 * d + 8 * d3                       # x (dbl,f32) + out (dbl,bf16) + temps
    resident = 4 * d * d3 + (1 << 16)               # dbl-buffered bf16 w_qkv + LN params
    tm, mp = _choose_rows(m, per_row, resident)
    if mp != m:
        # TODO(synk): a masked ragged final tile would avoid this extra HBM copy.
        x2 = jnp.pad(x2, ((0, mp - m), (0, 0)))
    est = resident + tm * per_row
    out = pl.pallas_call(
        _ln_qkv_kernel,
        out_shape=jax.ShapeDtypeStruct((mp, d3), jnp.bfloat16),
        grid_spec=pltpu.PrefetchScalarGridSpec(
            num_scalar_prefetch=0,
            grid=(mp // tm,),
            in_specs=[
                pl.BlockSpec((tm, d), lambda i: (i, 0)),    # x rows (pipelined)
                pl.BlockSpec((1, d), lambda i: (0, 0)),     # ln gamma (resident)
                pl.BlockSpec((1, d), lambda i: (0, 0)),     # ln beta  (resident)
                pl.BlockSpec((d, d3), lambda i: (0, 0)),    # w_qkv    (resident)
            ],
            out_specs=pl.BlockSpec((tm, d3), lambda i: (i, 0)),
        ),
        compiler_params=pltpu.CompilerParams(
            dimension_semantics=("parallel",),
            vmem_limit_bytes=_vmem_limit(est)),
        cost_estimate=pl.CostEstimate(
            flops=2 * mp * d * d3,
            bytes_accessed=mp * d * 4 + d * d3 * 2 + mp * d3 * 2,
            transcendentals=0),
    )(x2, gamma, beta, w_qkv)
    return out if mp == m else out[:m]


def _mha(qkv3, num_heads, head_dim, scale):
    b, n, d3 = qkv3.shape
    d = num_heads * head_dim
    kernel = functools.partial(_mha_kernel, num_heads=num_heads,
                               head_dim=head_dim, scale=scale)
    # qkv + out blocks (dbl-buffered bf16) + per-head (N,N) f32 softmax temps.
    est = 12 * n * d3 // 3 * 2 + 4 * n * d + 12 * n * n + (1 << 20)
    return pl.pallas_call(
        kernel,
        out_shape=jax.ShapeDtypeStruct((b, n, d), jnp.bfloat16),
        grid_spec=pltpu.PrefetchScalarGridSpec(
            num_scalar_prefetch=0,
            grid=(b,),
            in_specs=[pl.BlockSpec((None, n, d3), lambda i: (i, 0, 0))],
            out_specs=pl.BlockSpec((None, n, d), lambda i: (i, 0, 0)),
        ),
        compiler_params=pltpu.CompilerParams(
            dimension_semantics=("parallel",),
            vmem_limit_bytes=_vmem_limit(est)),
        cost_estimate=pl.CostEstimate(
            flops=4 * b * num_heads * n * n * head_dim,
            bytes_accessed=b * n * (d3 + d) * 2,
            transcendentals=b * num_heads * n * n),
    )(qkv3)


def _proj_mlp(x2, ctx, w_proj, b_proj, gamma, beta, w1, b1, w2, b2):
    m, d = x2.shape
    dh = w1.shape[1]
    per_row = 32 * d + 16 * dh                       # x/ctx/out tiles + h/z/u/GELU temps
    resident = 4 * d * d + 8 * d * dh + (1 << 17)    # dbl-buffered bf16 weights + biases
    tm, mp = _choose_rows(m, per_row, resident)
    if mp != m:
        x2 = jnp.pad(x2, ((0, mp - m), (0, 0)))
        ctx = jnp.pad(ctx, ((0, mp - m), (0, 0)))
    est = resident + tm * per_row
    row = lambda i: (i, 0)
    const = lambda i: (0, 0)
    out = pl.pallas_call(
        _proj_mlp_kernel,
        out_shape=jax.ShapeDtypeStruct((mp, d), jnp.float32),
        grid_spec=pltpu.PrefetchScalarGridSpec(
            num_scalar_prefetch=0,
            grid=(mp // tm,),
            in_specs=[
                pl.BlockSpec((tm, d), row),      # x residual (f32, pipelined)
                pl.BlockSpec((tm, d), row),      # attention context (bf16, pipelined)
                pl.BlockSpec((d, d), const),     # w_proj (resident)
                pl.BlockSpec((1, d), const),     # b_proj
                pl.BlockSpec((1, d), const),     # ln2 gamma
                pl.BlockSpec((1, d), const),     # ln2 beta
                pl.BlockSpec((d, dh), const),    # w_fc1
                pl.BlockSpec((1, dh), const),    # b_fc1
                pl.BlockSpec((dh, d), const),    # w_fc2
                pl.BlockSpec((1, d), const),     # b_fc2
            ],
            out_specs=pl.BlockSpec((tm, d), row),
        ),
        compiler_params=pltpu.CompilerParams(
            dimension_semantics=("parallel",),
            vmem_limit_bytes=_vmem_limit(est)),
        cost_estimate=pl.CostEstimate(
            flops=2 * mp * d * d + 4 * mp * d * dh,
            bytes_accessed=mp * d * 10 + (d * d + 2 * d * dh) * 2,
            transcendentals=mp * dh),
    )(x2, ctx, w_proj, b_proj, gamma, beta, w1, b1, w2, b2)
    return out if mp == m else out[:m]


@functools.partial(jax.jit, static_argnames=("num_heads",))
def block_forward(x, params, *, num_heads):
    """Pre-norm ViT Block forward. x: (B, N, D) float32 -> (B, N, D) float32."""
    b, n, d = x.shape
    hd = d // num_heads
    m = b * n
    x2 = x.reshape(m, d)

    # bf16 weights for MXU-native matmuls (f32 accumulation in the kernels).
    w_qkv = params["w_qkv"].astype(jnp.bfloat16)
    w_proj = params["w_proj"].astype(jnp.bfloat16)
    w_fc1 = params["w_fc1"].astype(jnp.bfloat16)
    w_fc2 = params["w_fc2"].astype(jnp.bfloat16)

    g1 = params["ln1_g"].reshape(1, d)
    be1 = params["ln1_b"].reshape(1, d)
    g2 = params["ln2_g"].reshape(1, d)
    be2 = params["ln2_b"].reshape(1, d)
    bp = params["b_proj"].reshape(1, d)
    bf1 = params["b_fc1"].reshape(1, -1)
    bf2 = params["b_fc2"].reshape(1, d)

    # --- K1: LayerNorm1 + qkv projection -> bf16 (M, 3D); reshape is free ---
    qkv = _ln_qkv(x2, g1, be1, w_qkv).reshape(b, n, 3 * d)

    # --- K2: per-batch all-head attention. Head split/merge handled in-kernel by
    #         lane slicing, so no XLA 5D transpose / extra HBM round trip. ---
    ctx = _mha(qkv, num_heads, hd, hd ** -0.5).reshape(m, d)   # (M, D) bf16

    # --- K3: proj + residual + LayerNorm2 + MLP + residual (fused) ---
    out = _proj_mlp(x2, ctx, w_proj, bp, g2, be2, w_fc1, bf1, w_fc2, bf2)
    return out.reshape(b, n, d)


# --------------------------- pure-JAX reference (f32) ---------------------------

def _block_reference(x, params, num_heads):
    b, n, d = x.shape
    hd = d // num_heads

    def ln(t, g, bb):
        mu = t.mean(-1, keepdims=True)
        var = ((t - mu) ** 2).mean(-1, keepdims=True)
        return (t - mu) / jnp.sqrt(var + LN_EPS) * g + bb

    xn = ln(x, params["ln1_g"], params["ln1_b"])
    qkv = xn @ params["w_qkv"]
    qkv = qkv.reshape(b, n, 3, num_heads, hd).transpose(2, 0, 3, 1, 4)
    q, k, v = qkv[0], qkv[1], qkv[2]
    attn = jnp.einsum("bhqd,bhkd->bhqk", q, k) * (hd ** -0.5)
    attn = jax.nn.softmax(attn, axis=-1)
    ctx = jnp.einsum("bhqk,bhkd->bhqd", attn, v)
    ctx = ctx.transpose(0, 2, 1, 3).reshape(b, n, d)
    h = x + ctx @ params["w_proj"] + params["b_proj"]
    z = ln(h, params["ln2_g"], params["ln2_b"])
    y = jax.nn.gelu(z @ params["w_fc1"] + params["b_fc1"],
                    approximate=False) @ params["w_fc2"] + params["b_fc2"]
    return h + y


if __name__ == "__main__":
    # Small shapes consistent with the module: B=2, seq N=8, dim D=32, 4 heads, mlp x4.
    B, N, D = 2, 8, 32
    NUM_HEADS = 4
    DH = int(D * 4.0)  # 128

    key = jax.random.PRNGKey(0)
    ks = jax.random.split(key, 12)

    x = jax.random.normal(ks[0], (B, N, D), dtype=jnp.float32)
    params = {
        # Dense weights stored as (in_features, out_features) == torch weight.T.
        "w_qkv": 0.02 * jax.random.normal(ks[1], (D, 3 * D), jnp.float32),
        "w_proj": 0.02 * jax.random.normal(ks[2], (D, D), jnp.float32),
        "b_proj": 0.01 * jax.random.normal(ks[3], (D,), jnp.float32),
        "w_fc1": 0.02 * jax.random.normal(ks[4], (D, DH), jnp.float32),
        "b_fc1": 0.01 * jax.random.normal(ks[5], (DH,), jnp.float32),
        "w_fc2": 0.02 * jax.random.normal(ks[6], (DH, D), jnp.float32),
        "b_fc2": 0.01 * jax.random.normal(ks[7], (D,), jnp.float32),
        "ln1_g": 1.0 + 0.05 * jax.random.normal(ks[8], (D,), jnp.float32),
        "ln1_b": 0.02 * jax.random.normal(ks[9], (D,), jnp.float32),
        "ln2_g": 1.0 + 0.05 * jax.random.normal(ks[10], (D,), jnp.float32),
        "ln2_b": 0.02 * jax.random.normal(ks[11], (D,), jnp.float32),
    }

    out = block_forward(x, params, num_heads=NUM_HEADS)
    jax.block_until_ready(out)

    ref = _block_reference(x, params, NUM_HEADS)
    assert out.shape == (B, N, D)
    max_err = float(jnp.max(jnp.abs(out - ref)))
    # bf16 matmul inputs / bf16 intermediates with f32 accumulation -> looser than f32.
    assert jnp.allclose(out, ref, atol=2e-2, rtol=2e-2), f"max|diff|={max_err}"
    print("KERNEL_OK")
</pallas_src>

<mosaic_0001>
module attributes {stable_mosaic.version = 11 : i64} {
  func.func @_ln_qkv_kernel(%arg0: i32, %arg1: memref<16x32xf32, #tpu.memory_space<vmem>>, %arg2: memref<1x32xf32, #tpu.memory_space<vmem>>, %arg3: memref<1x32xf32, #tpu.memory_space<vmem>>, %arg4: memref<32x96xbf16, #tpu.memory_space<vmem>>, %arg5: memref<16x96xbf16, #tpu.memory_space<vmem>>) attributes {dimension_semantics = [#tpu.dimension_semantics<parallel>], iteration_bounds = array<i64: 1>, scalar_prefetch = 0 : i64, scratch_operands = 0 : i64, tpu.core_type = #tpu.core_type<tc>, window_params = [{transform_indices = @transform_0, window_bounds = array<i64: 16, 32>}, {pipeline_mode = #tpu.pipeline_mode<synchronous>, transform_indices = @transform_1, window_bounds = array<i64: 1, 32>}, {pipeline_mode = #tpu.pipeline_mode<synchronous>, transform_indices = @transform_2, window_bounds = array<i64: 1, 32>}, {pipeline_mode = #tpu.pipeline_mode<synchronous>, transform_indices = @transform_3, window_bounds = array<i64: 32, 96>}, {transform_indices = @transform_4, window_bounds = array<i64: 16, 96>}]} {
    %c0 = arith.constant 0 : index
    %c0_0 = arith.constant 0 : index
    %0 = vector.load %arg1[%c0, %c0_0] : memref<16x32xf32, #tpu.memory_space<vmem>>, vector<16x32xf32>
    %c0_1 = arith.constant 0 : index
    %c0_2 = arith.constant 0 : index
    %1 = vector.load %arg2[%c0_1, %c0_2] : memref<1x32xf32, #tpu.memory_space<vmem>>, vector<1x32xf32>
    %c0_3 = arith.constant 0 : index
    %c0_4 = arith.constant 0 : index
    %2 = vector.load %arg3[%c0_3, %c0_4] : memref<1x32xf32, #tpu.memory_space<vmem>>, vector<1x32xf32>
    %cst = arith.constant dense<0.000000e+00> : vector<16xf32>
    %3 = vector.multi_reduction <add>, %0, %cst [1] : vector<16x32xf32> to vector<16xf32>
    %4 = vector.shape_cast %3 : vector<16xf32> to vector<16x1xf32>
    %cst_5 = arith.constant 3.200000e+01 : f32
    %5 = vector.broadcast %cst_5 : f32 to vector<16x1xf32>
    %6 = arith.divf %4, %5 : vector<16x1xf32>
    %7 = vector.broadcast %6 : vector<16x1xf32> to vector<16x32xf32>
    %8 = arith.subf %0, %7 : vector<16x32xf32>
    %9 = arith.mulf %8, %8 : vector<16x32xf32>
    %cst_6 = arith.constant dense<0.000000e+00> : vector<16xf32>
    %10 = vector.multi_reduction <add>, %9, %cst_6 [1] : vector<16x32xf32> to vector<16xf32>
    %11 = vector.shape_cast %10 : vector<16xf32> to vector<16x1xf32>
    %cst_7 = arith.constant 3.200000e+01 : f32
    %12 = vector.broadcast %cst_7 : f32 to vector<16x1xf32>
    %13 = arith.divf %11, %12 : vector<16x1xf32>
    %cst_8 = arith.constant 9.99999974E-6 : f32
    %14 = vector.broadcast %cst_8 : f32 to vector<16x1xf32>
    %15 = arith.addf %13, %14 : vector<16x1xf32>
    %16 = math.rsqrt %15 : vector<16x1xf32>
    %17 = vector.broadcast %16 : vector<16x1xf32> to vector<16x32xf32>
    %18 = arith.mulf %8, %17 : vector<16x32xf32>
    %19 = vector.broadcast %1 : vector<1x32xf32> to vector<16x32xf32>
    %20 = arith.mulf %18, %19 : vector<16x32xf32>
    %21 = vector.broadcast %2 : vector<1x32xf32> to vector<16x32xf32>
    %22 = arith.addf %20, %21 : vector<16x32xf32>
    %23 = arith.truncf %22 : vector<16x32xf32> to vector<16x32xbf16>
    %c0_9 = arith.constant 0 : index
    %c0_10 = arith.constant 0 : index
    %24 = vector.load %arg4[%c0_9, %c0_10] : memref<32x96xbf16, #tpu.memory_space<vmem>>, vector<32x96xbf16>
    %cst_11 = arith.constant dense<0.000000e+00> : vector<16x96xf32>
    %25 = tpu.matmul %23, %24, %cst_11 {dimension_numbers = #tpu.dot_dimension_numbers<[1], [0], [0], [1], [0, 0, 1, 1], [], []>} : vector<16x32xbf16>, vector<32x96xbf16>, vector<16x96xf32> -> vector<16x96xf32>
    %26 = arith.truncf %25 : vector<16x96xf32> to vector<16x96xbf16>
    %c0_12 = arith.constant 0 : index
    %c0_13 = arith.constant 0 : index
    %27 = vector.load %arg5[%c0_12, %c0_13] : memref<16x96xbf16, #tpu.memory_space<vmem>>, vector<16x96xbf16>
    tpu.vector_store %arg5[%c0_12, %c0_13], %26 {strides = array<i32>} : memref<16x96xbf16, #tpu.memory_space<vmem>>, vector<16x96xbf16>,
    return
  }
  func.func @transform_0(%arg0: i32) -> (i32, i32) {
    %c0_i32 = arith.constant 0 : i32
    %c0_i32_0 = arith.constant 0 : i32
    return %arg0, %c0_i32 : i32, i32
  }
  func.func @transform_1(%arg0: i32) -> (i32, i32) {
    %c0_i32 = arith.constant 0 : i32
    %c0_i32_0 = arith.constant 0 : i32
    %c0_i32_1 = arith.constant 0 : i32
    return %c0_i32, %c0_i32_0 : i32, i32
  }
  func.func @transform_2(%arg0: i32) -> (i32, i32) {
    %c0_i32 = arith.constant 0 : i32
    %c0_i32_0 = arith.constant 0 : i32
    %c0_i32_1 = arith.constant 0 : i32
    return %c0_i32, %c0_i32_0 : i32, i32
  }
  func.func @transform_3(%arg0: i32) -> (i32, i32) {
    %c0_i32 = arith.constant 0 : i32
    %c0_i32_0 = arith.constant 0 : i32
    %c0_i32_1 = arith.constant 0 : i32
    return %c0_i32, %c0_i32_0 : i32, i32
  }
  func.func @transform_4(%arg0: i32) -> (i32, i32) {
    %c0_i32 = arith.constant 0 : i32
    %c0_i32_0 = arith.constant 0 : i32
    return %arg0, %c0_i32 : i32, i32
  }
}

module attributes {stable_mosaic.version = 11 : i64} {
  func.func @_mha_kernel(%arg0: i32, %arg1: memref<1x8x96xbf16, #tpu.memory_space<vmem>>, %arg2: memref<1x8x32xbf16, #tpu.memory_space<vmem>>) attributes {dimension_semantics = [#tpu.dimension_semantics<parallel>], iteration_bounds = array<i64: 2>, scalar_prefetch = 0 : i64, scratch_operands = 0 : i64, tpu.core_type = #tpu.core_type<tc>, window_params = [{transform_indices = @transform_0, window_bounds = array<i64: 1, 8, 96>}, {transform_indices = @transform_1, window_bounds = array<i64: 1, 8, 32>}]} {
    %c0 = arith.constant 0 : index
    %c0_0 = arith.constant 0 : index
    %c0_1 = arith.constant 0 : index
    %0 = vector.load %arg1[%c0, %c0_0, %c0_1] : memref<1x8x96xbf16, #tpu.memory_space<vmem>>, vector<1x8x8xbf16>
    %1 = vector.shape_cast %0 : vector<1x8x8xbf16> to vector<8x8xbf16>
    %c0_2 = arith.constant 0 : index
    %c0_3 = arith.constant 0 : index
    %c32 = arith.constant 32 : index
    %2 = vector.load %arg1[%c0_2, %c0_3, %c32] : memref<1x8x96xbf16, #tpu.memory_space<vmem>>, vector<1x8x8xbf16>
    %3 = vector.shape_cast %2 : vector<1x8x8xbf16> to vector<8x8xbf16>
    %c0_4 = arith.constant 0 : index
    %c0_5 = arith.constant 0 : index
    %c64 = arith.constant 64 : index
    %4 = vector.load %arg1[%c0_4, %c0_5, %c64] : memref<1x8x96xbf16, #tpu.memory_space<vmem>>, vector<1x8x8xbf16>
    %5 = vector.shape_cast %4 : vector<1x8x8xbf16> to vector<8x8xbf16>
    %cst = arith.constant dense<0.000000e+00> : vector<8x8xf32>
    %6 = tpu.matmul %1, %3, %cst {dimension_numbers = #tpu.dot_dimension_numbers<[1], [1], [0], [0], [0, 0, 1, 0], [], []>} : vector<8x8xbf16>, vector<8x8xbf16>, vector<8x8xf32> -> vector<8x8xf32>
    %cst_6 = arith.constant 0.353553385 : f32
    %7 = vector.broadcast %cst_6 : f32 to vector<8x8xf32>
    %8 = arith.mulf %6, %7 : vector<8x8xf32>
    %cst_7 = arith.constant dense<0xFF800000> : vector<8xf32>
    %9 = vector.multi_reduction <maximumf>, %8, %cst_7 [1] : vector<8x8xf32> to vector<8xf32>
    %10 = vector.shape_cast %9 : vector<8xf32> to vector<8x1xf32>
    %11 = vector.broadcast %10 : vector<8x1xf32> to vector<8x8xf32>
    %12 = arith.subf %8, %11 : vector<8x8xf32>
    %13 = math.exp %12 : vector<8x8xf32>
    %cst_8 = arith.constant dense<0.000000e+00> : vector<8xf32>
    %14 = vector.multi_reduction <add>, %13, %cst_8 [1] : vector<8x8xf32> to vector<8xf32>
    %15 = vector.shape_cast %14 : vector<8xf32> to vector<8x1xf32>
    %16 = arith.truncf %13 : vector<8x8xf32> to vector<8x8xbf16>
    %cst_9 = arith.constant dense<0.000000e+00> : vector<8x8xf32>
    %17 = tpu.matmul %16, %5, %cst_9 {dimension_numbers = #tpu.dot_dimension_numbers<[1], [0], [0], [1], [0, 0, 1, 1], [], []>} : vector<8x8xbf16>, vector<8x8xbf16>, vector<8x8xf32> -> vector<8x8xf32>
    %18 = tpu.reciprocal %15 {approx = true} : vector<8x1xf32> -> vector<8x1xf32>
    %19 = vector.broadcast %18 : vector<8x1xf32> to vector<8x8xf32>
    %20 = arith.mulf %17, %19 : vector<8x8xf32>
    %21 = arith.truncf %20 : vector<8x8xf32> to vector<8x8xbf16>
    %c0_10 = arith.constant 0 : index
    %c0_11 = arith.constant 0 : index
    %c8 = arith.constant 8 : index
    %22 = vector.load %arg1[%c0_10, %c0_11, %c8] : memref<1x8x96xbf16, #tpu.memory_space<vmem>>, vector<1x8x8xbf16>
    %23 = vector.shape_cast %22 : vector<1x8x8xbf16> to vector<8x8xbf16>
    %c0_12 = arith.constant 0 : index
    %c0_13 = arith.constant 0 : index
    %c40 = arith.constant 40 : index
    %24 = vector.load %arg1[%c0_12, %c0_13, %c40] : memref<1x8x96xbf16, #tpu.memory_space<vmem>>, vector<1x8x8xbf16>
    %25 = vector.shape_cast %24 : vector<1x8x8xbf16> to vector<8x8xbf16>
    %c0_14 = arith.constant 0 : index
    %c0_15 = arith.constant 0 : index
    %c72 = arith.constant 72 : index
    %26 = vector.load %arg1[%c0_14, %c0_15, %c72] : memref<1x8x96xbf16, #tpu.memory_space<vmem>>, vector<1x8x8xbf16>
    %27 = vector.shape_cast %26 : vector<1x8x8xbf16> to vector<8x8xbf16>
    %cst_16 = arith.constant dense<0.000000e+00> : vector<8x8xf32>
    %28 = tpu.matmul %23, %25, %cst_16 {dimension_numbers = #tpu.dot_dimension_numbers<[1], [1], [0], [0], [0, 0, 1, 0], [], []>} : vector<8x8xbf16>, vector<8x8xbf16>, vector<8x8xf32> -> vector<8x8xf32>
    %cst_17 = arith.constant 0.353553385 : f32
    %29 = vector.broadcast %cst_17 : f32 to vector<8x8xf32>
    %30 = arith.mulf %28, %29 : vector<8x8xf32>
    %cst_18 = arith.constant dense<0xFF800000> : vector<8xf32>
    %31 = vector.multi_reduction <maximumf>, %30, %cst_18 [1] : vector<8x8xf32> to vector<8xf32>
    %32 = vector.shape_cast %31 : vector<8xf32> to vector<8x1xf32>
    %33 = vector.broadcast %32 : vector<8x1xf32> to vector<8x8xf32>
    %34 = arith.subf %30, %33 : vector<8x8xf32>
    %35 = math.exp %34 : vector<8x8xf32>
    %cst_19 = arith.constant dense<0.000000e+00> : vector<8xf32>
    %36 = vector.multi_reduction <add>, %35, %cst_19 [1] : vector<8x8xf32> to vector<8xf32>
    %37 = vector.shape_cast %36 : vector<8xf32> to vector<8x1xf32>
    %38 = arith.truncf %35 : vector<8x8xf32> to vector<8x8xbf16>
    %cst_20 = arith.constant dense<0.000000e+00> : vector<8x8xf32>
    %39 = tpu.matmul %38, %27, %cst_20 {dimension_numbers = #tpu.dot_dimension_numbers<[1], [0], [0], [1], [0, 0, 1, 1], [], []>} : vector<8x8xbf16>, vector<8x8xbf16>, vector<8x8xf32> -> vector<8x8xf32>
    %40 = tpu.reciprocal %37 {approx = true} : vector<8x1xf32> -> vector<8x1xf32>
    %41 = vector.broadcast %40 : vector<8x1xf32> to vector<8x8xf32>
    %42 = arith.mulf %39, %41 : vector<8x8xf32>
    %43 = arith.truncf %42 : vector<8x8xf32> to vector<8x8xbf16>
    %c0_21 = arith.constant 0 : index
    %c0_22 = arith.constant 0 : index
    %c16 = arith.constant 16 : index
    %44 = vector.load %arg1[%c0_21, %c0_22, %c16] : memref<1x8x96xbf16, #tpu.memory_space<vmem>>, vector<1x8x8xbf16>
    %45 = vector.shape_cast %44 : vector<1x8x8xbf16> to vector<8x8xbf16>
    %c0_23 = arith.constant 0 : index
    %c0_24 = arith.constant 0 : index
    %c48 = arith.constant 48 : index
    %46 = vector.load %arg1[%c0_23, %c0_24, %c48] : memref<1x8x96xbf16, #tpu.memory_space<vmem>>, vector<1x8x8xbf16>
    %47 = vector.shape_cast %46 : vector<1x8x8xbf16> to vector<8x8xbf16>
    %c0_25 = arith.constant 0 : index
    %c0_26 = arith.constant 0 : index
    %c80 = arith.constant 80 : index
    %48 = vector.load %arg1[%c0_25, %c0_26, %c80] : memref<1x8x96xbf16, #tpu.memory_space<vmem>>, vector<1x8x8xbf16>
    %49 = vector.shape_cast %48 : vector<1x8x8xbf16> to vector<8x8xbf16>
    %cst_27 = arith.constant dense<0.000000e+00> : vector<8x8xf32>
    %50 = tpu.matmul %45, %47, %cst_27 {dimension_numbers = #tpu.dot_dimension_numbers<[1], [1], [0], [0], [0, 0, 1, 0], [], []>} : vector<8x8xbf16>, vector<8x8xbf16>, vector<8x8xf32> -> vector<8x8xf32>
    %cst_28 = arith.constant 0.353553385 : f32
    %51 = vector.broadcast %cst_28 : f32 to vector<8x8xf32>
    %52 = arith.mulf %50, %51 : vector<8x8xf32>
    %cst_29 = arith.constant dense<0xFF800000> : vector<8xf32>
    %53 = vector.multi_reduction <maximumf>, %52, %cst_29 [1] : vector<8x8xf32> to vector<8xf32>
    %54 = vector.shape_cast %53 : vector<8xf32> to vector<8x1xf32>
    %55 = vector.broadcast %54 : vector<8x1xf32> to vector<8x8xf32>
    %56 = arith.subf %52, %55 : vector<8x8xf32>
    %57 = math.exp %56 : vector<8x8xf32>
    %cst_30 = arith.constant dense<0.000000e+00> : vector<8xf32>
    %58 = vector.multi_reduction <add>, %57, %cst_30 [1] : vector<8x8xf32> to vector<8xf32>
    %59 = vector.shape_cast %58 : vector<8xf32> to vector<8x1xf32>
    %60 = arith.truncf %57 : vector<8x8xf32> to vector<8x8xbf16>
    %cst_31 = arith.constant dense<0.000000e+00> : vector<8x8xf32>
    %61 = tpu.matmul %60, %49, %cst_31 {dimension_numbers = #tpu.dot_dimension_numbers<[1], [0], [0], [1], [0, 0, 1, 1], [], []>} : vector<8x8xbf16>, vector<8x8xbf16>, vector<8x8xf32> -> vector<8x8xf32>
    %62 = tpu.reciprocal %59 {approx = true} : vector<8x1xf32> -> vector<8x1xf32>
    %63 = vector.broadcast %62 : vector<8x1xf32> to vector<8x8xf32>
    %64 = arith.mulf %61, %63 : vector<8x8xf32>
    %65 = arith.truncf %64 : vector<8x8xf32> to vector<8x8xbf16>
    %c0_32 = arith.constant 0 : index
    %c0_33 = arith.constant 0 : index
    %c24 = arith.constant 24 : index
    %66 = vector.load %arg1[%c0_32, %c0_33, %c24] : memref<1x8x96xbf16, #tpu.memory_space<vmem>>, vector<1x8x8xbf16>
    %67 = vector.shape_cast %66 : vector<1x8x8xbf16> to vector<8x8xbf16>
    %c0_34 = arith.constant 0 : index
    %c0_35 = arith.constant 0 : index
    %c56 = arith.constant 56 : index
    %68 = vector.load %arg1[%c0_34, %c0_35, %c56] : memref<1x8x96xbf16, #tpu.memory_space<vmem>>, vector<1x8x8xbf16>
    %69 = vector.shape_cast %68 : vector<1x8x8xbf16> to vector<8x8xbf16>
    %c0_36 = arith.constant 0 : index
    %c0_37 = arith.constant 0 : index
    %c88 = arith.constant 88 : index
    %70 = vector.load %arg1[%c0_36, %c0_37, %c88] : memref<1x8x96xbf16, #tpu.memory_space<vmem>>, vector<1x8x8xbf16>
    %71 = vector.shape_cast %70 : vector<1x8x8xbf16> to vector<8x8xbf16>
    %cst_38 = arith.constant dense<0.000000e+00> : vector<8x8xf32>
    %72 = tpu.matmul %67, %69, %cst_38 {dimension_numbers = #tpu.dot_dimension_numbers<[1], [1], [0], [0], [0, 0, 1, 0], [], []>} : vector<8x8xbf16>, vector<8x8xbf16>, vector<8x8xf32> -> vector<8x8xf32>
    %cst_39 = arith.constant 0.353553385 : f32
    %73 = vector.broadcast %cst_39 : f32 to vector<8x8xf32>
    %74 = arith.mulf %72, %73 : vector<8x8xf32>
    %cst_40 = arith.constant dense<0xFF800000> : vector<8xf32>
    %75 = vector.multi_reduction <maximumf>, %74, %cst_40 [1] : vector<8x8xf32> to vector<8xf32>
    %76 = vector.shape_cast %75 : vector<8xf32> to vector<8x1xf32>
    %77 = vector.broadcast %76 : vector<8x1xf32> to vector<8x8xf32>
    %78 = arith.subf %74, %77 : vector<8x8xf32>
    %79 = math.exp %78 : vector<8x8xf32>
    %cst_41 = arith.constant dense<0.000000e+00> : vector<8xf32>
    %80 = vector.multi_reduction <add>, %79, %cst_41 [1] : vector<8x8xf32> to vector<8xf32>
    %81 = vector.shape_cast %80 : vector<8xf32> to vector<8x1xf32>
    %82 = arith.truncf %79 : vector<8x8xf32> to vector<8x8xbf16>
    %cst_42 = arith.constant dense<0.000000e+00> : vector<8x8xf32>
    %83 = tpu.matmul %82, %71, %cst_42 {dimension_numbers = #tpu.dot_dimension_numbers<[1], [0], [0], [1], [0, 0, 1, 1], [], []>} : vector<8x8xbf16>, vector<8x8xbf16>, vector<8x8xf32> -> vector<8x8xf32>
    %84 = tpu.reciprocal %81 {approx = true} : vector<8x1xf32> -> vector<8x1xf32>
    %85 = vector.broadcast %84 : vector<8x1xf32> to vector<8x8xf32>
    %86 = arith.mulf %83, %85 : vector<8x8xf32>
    %87 = arith.truncf %86 : vector<8x8xf32> to vector<8x8xbf16>
    %88 = tpu.concatenate %21, %43, %65, %87 in 1 : vector<8x8xbf16>, vector<8x8xbf16>, vector<8x8xbf16>, vector<8x8xbf16> -> vector<8x32xbf16>
    %c0_43 = arith.constant 0 : index
    %c0_44 = arith.constant 0 : index
    %c0_45 = arith.constant 0 : index
    %89 = vector.load %arg2[%c0_43, %c0_44, %c0_45] : memref<1x8x32xbf16, #tpu.memory_space<vmem>>, vector<1x8x32xbf16>
    %90 = vector.shape_cast %89 : vector<1x8x32xbf16> to vector<8x32xbf16>
    %91 = vector.shape_cast %88 : vector<8x32xbf16> to vector<1x8x32xbf16>
    tpu.vector_store %arg2[%c0_43, %c0_44, %c0_45], %91 {strides = array<i32>} : memref<1x8x32xbf16, #tpu.memory_space<vmem>>, vector<1x8x32xbf16>,
    return
  }
  func.func @transform_0(%arg0: i32) -> (i32, i32, i32) {
    %c0_i32 = arith.constant 0 : i32
    %c0_i32_0 = arith.constant 0 : i32
    %c0_i32_1 = arith.constant 0 : i32
    return %arg0, %c0_i32, %c0_i32_0 : i32, i32, i32
  }
  func.func @transform_1(%arg0: i32) -> (i32, i32, i32) {
    %c0_i32 = arith.constant 0 : i32
    %c0_i32_0 = arith.constant 0 : i32
    %c0_i32_1 = arith.constant 0 : i32
    return %arg0, %c0_i32, %c0_i32_0 : i32, i32, i32
  }
}

module attributes {stable_mosaic.version = 11 : i64} {
  func.func @_proj_mlp_kernel(%arg0: i32, %arg1: memref<16x32xf32, #tpu.memory_space<vmem>>, %arg2: memref<16x32xbf16, #tpu.memory_space<vmem>>, %arg3: memref<32x32xbf16, #tpu.memory_space<vmem>>, %arg4: memref<1x32xf32, #tpu.memory_space<vmem>>, %arg5: memref<1x32xf32, #tpu.memory_space<vmem>>, %arg6: memref<1x32xf32, #tpu.memory_space<vmem>>, %arg7: memref<32x128xbf16, #tpu.memory_space<vmem>>, %arg8: memref<1x128xf32, #tpu.memory_space<vmem>>, %arg9: memref<128x32xbf16, #tpu.memory_space<vmem>>, %arg10: memref<1x32xf32, #tpu.memory_space<vmem>>, %arg11: memref<16x32xf32, #tpu.memory_space<vmem>>) attributes {dimension_semantics = [#tpu.dimension_semantics<parallel>], iteration_bounds = array<i64: 1>, scalar_prefetch = 0 : i64, scratch_operands = 0 : i64, tpu.core_type = #tpu.core_type<tc>, window_params = [{transform_indices = @transform_0, window_bounds = array<i64: 16, 32>}, {transform_indices = @transform_1, window_bounds = array<i64: 16, 32>}, {pipeline_mode = #tpu.pipeline_mode<synchronous>, transform_indices = @transform_2, window_bounds = array<i64: 32, 32>}, {pipeline_mode = #tpu.pipeline_mode<synchronous>, transform_indices = @transform_3, window_bounds = array<i64: 1, 32>}, {pipeline_mode = #tpu.pipeline_mode<synchronous>, transform_indices = @transform_4, window_bounds = array<i64: 1, 32>}, {pipeline_mode = #tpu.pipeline_mode<synchronous>, transform_indices = @transform_5, window_bounds = array<i64: 1, 32>}, {pipeline_mode = #tpu.pipeline_mode<synchronous>, transform_indices = @transform_6, window_bounds = array<i64: 32, 128>}, {pipeline_mode = #tpu.pipeline_mode<synchronous>, transform_indices = @transform_7, window_bounds = array<i64: 1, 128>}, {pipeline_mode = #tpu.pipeline_mode<synchronous>, transform_indices = @transform_8, window_bounds = array<i64: 128, 32>}, {pipeline_mode = #tpu.pipeline_mode<synchronous>, transform_indices = @transform_9, window_bounds = array<i64: 1, 32>}, {transform_indices = @transform_10, window_bounds = array<i64: 16, 32>}]} {
    %c0 = arith.constant 0 : index
    %c0_0 = arith.constant 0 : index
    %0 = vector.load %arg1[%c0, %c0_0] : memref<16x32xf32, #tpu.memory_space<vmem>>, vector<16x32xf32>
    %c0_1 = arith.constant 0 : index
    %c0_2 = arith.constant 0 : index
    %1 = vector.load %arg2[%c0_1, %c0_2] : memref<16x32xbf16, #tpu.memory_space<vmem>>, vector<16x32xbf16>
    %c0_3 = arith.constant 0 : index
    %c0_4 = arith.constant 0 : index
    %2 = vector.load %arg3[%c0_3, %c0_4] : memref<32x32xbf16, #tpu.memory_space<vmem>>, vector<32x32xbf16>
    %cst = arith.constant dense<0.000000e+00> : vector<16x32xf32>
    %3 = tpu.matmul %1, %2, %cst {dimension_numbers = #tpu.dot_dimension_numbers<[1], [0], [0], [1], [0, 0, 1, 1], [], []>} : vector<16x32xbf16>, vector<32x32xbf16>, vector<16x32xf32> -> vector<16x32xf32>
    %c0_5 = arith.constant 0 : index
    %c0_6 = arith.constant 0 : index
    %4 = vector.load %arg4[%c0_5, %c0_6] : memref<1x32xf32, #tpu.memory_space<vmem>>, vector<1x32xf32>
    %5 = vector.broadcast %4 : vector<1x32xf32> to vector<16x32xf32>
    %6 = arith.addf %3, %5 : vector<16x32xf32>
    %7 = arith.addf %0, %6 : vector<16x32xf32>
    %c0_7 = arith.constant 0 : index
    %c0_8 = arith.constant 0 : index
    %8 = vector.load %arg5[%c0_7, %c0_8] : memref<1x32xf32, #tpu.memory_space<vmem>>, vector<1x32xf32>
    %c0_9 = arith.constant 0 : index
    %c0_10 = arith.constant 0 : index
    %9 = vector.load %arg6[%c0_9, %c0_10] : memref<1x32xf32, #tpu.memory_space<vmem>>, vector<1x32xf32>
    %cst_11 = arith.constant dense<0.000000e+00> : vector<16xf32>
    %10 = vector.multi_reduction <add>, %7, %cst_11 [1] : vector<16x32xf32> to vector<16xf32>
    %11 = vector.shape_cast %10 : vector<16xf32> to vector<16x1xf32>
    %cst_12 = arith.constant 3.200000e+01 : f32
    %12 = vector.broadcast %cst_12 : f32 to vector<16x1xf32>
    %13 = arith.divf %11, %12 : vector<16x1xf32>
    %14 = vector.broadcast %13 : vector<16x1xf32> to vector<16x32xf32>
    %15 = arith.subf %7, %14 : vector<16x32xf32>
    %16 = arith.mulf %15, %15 : vector<16x32xf32>
    %cst_13 = arith.constant dense<0.000000e+00> : vector<16xf32>
    %17 = vector.multi_reduction <add>, %16, %cst_13 [1] : vector<16x32xf32> to vector<16xf32>
    %18 = vector.shape_cast %17 : vector<16xf32> to vector<16x1xf32>
    %cst_14 = arith.constant 3.200000e+01 : f32
    %19 = vector.broadcast %cst_14 : f32 to vector<16x1xf32>
    %20 = arith.divf %18, %19 : vector<16x1xf32>
    %cst_15 = arith.constant 9.99999974E-6 : f32
    %21 = vector.broadcast %cst_15 : f32 to vector<16x1xf32>
    %22 = arith.addf %20, %21 : vector<16x1xf32>
    %23 = math.rsqrt %22 : vector<16x1xf32>
    %24 = vector.broadcast %23 : vector<16x1xf32> to vector<16x32xf32>
    %25 = arith.mulf %15, %24 : vector<16x32xf32>
    %26 = vector.broadcast %8 : vector<1x32xf32> to vector<16x32xf32>
    %27 = arith.mulf %25, %26 : vector<16x32xf32>
    %28 = vector.broadcast %9 : vector<1x32xf32> to vector<16x32xf32>
    %29 = arith.addf %27, %28 : vector<16x32xf32>
    %30 = arith.truncf %29 : vector<16x32xf32> to vector<16x32xbf16>
    %c0_16 = arith.constant 0 : index
    %c0_17 = arith.constant 0 : index
    %31 = vector.load %arg7[%c0_16, %c0_17] : memref<32x128xbf16, #tpu.memory_space<vmem>>, vector<32x128xbf16>
    %cst_18 = arith.constant dense<0.000000e+00> : vector<16x128xf32>
    %32 = tpu.matmul %30, %31, %cst_18 {dimension_numbers = #tpu.dot_dimension_numbers<[1], [0], [0], [1], [0, 0, 1, 1], [], []>} : vector<16x32xbf16>, vector<32x128xbf16>, vector<16x128xf32> -> vector<16x128xf32>
    %c0_19 = arith.constant 0 : index
    %c0_20 = arith.constant 0 : index
    %33 = vector.load %arg8[%c0_19, %c0_20] : memref<1x128xf32, #tpu.memory_space<vmem>>, vector<1x128xf32>
    %34 = vector.broadcast %33 : vector<1x128xf32> to vector<16x128xf32>
    %35 = arith.addf %32, %34 : vector<16x128xf32>
    %cst_21 = arith.constant 5.000000e-01 : f32
    %36 = vector.broadcast %cst_21 : f32 to vector<16x128xf32>
    %37 = arith.mulf %36, %35 : vector<16x128xf32>
    %cst_22 = arith.constant 0.707106769 : f32
    %38 = vector.broadcast %cst_22 : f32 to vector<16x128xf32>
    %39 = arith.mulf %35, %38 : vector<16x128xf32>
    %cst_23 = arith.constant 0.000000e+00 : f32
    %40 = vector.broadcast %cst_23 : f32 to vector<16x128xf32>
    %41 = arith.cmpf oge, %39, %40 : vector<16x128xf32>
    %cst_24 = arith.constant 1.000000e+00 : f32
    %cst_25 = arith.constant -1.000000e+00 : f32
    %42 = vector.broadcast %cst_24 : f32 to vector<16x128xf32>
    %43 = vector.broadcast %cst_25 : f32 to vector<16x128xf32>
    %44 = arith.select %41, %42, %43 : vector<16x128xi1>, vector<16x128xf32>
    %45 = math.absf %39 : vector<16x128xf32>
    %cst_26 = arith.constant 0.327591091 : f32
    %46 = vector.broadcast %cst_26 : f32 to vector<16x128xf32>
    %47 = arith.mulf %46, %45 : vector<16x128xf32>
    %cst_27 = arith.constant 1.000000e+00 : f32
    %48 = vector.broadcast %cst_27 : f32 to vector<16x128xf32>
    %49 = arith.addf %48, %47 : vector<16x128xf32>
    %50 = tpu.reciprocal %49 {approx = true} : vector<16x128xf32> -> vector<16x128xf32>
    %cst_28 = arith.constant 1.06140542 : f32
    %51 = vector.broadcast %cst_28 : f32 to vector<16x128xf32>
    %52 = arith.mulf %50, %51 : vector<16x128xf32>
    %cst_29 = arith.constant -1.45315206 : f32
    %53 = vector.broadcast %cst_29 : f32 to vector<16x128xf32>
    %54 = arith.addf %53, %52 : vector<16x128xf32>
    %55 = arith.mulf %50, %54 : vector<16x128xf32>
    %cst_30 = arith.constant 1.42141378 : f32
    %56 = vector.broadcast %cst_30 : f32 to vector<16x128xf32>
    %57 = arith.addf %56, %55 : vector<16x128xf32>
    %58 = arith.mulf %50, %57 : vector<16x128xf32>
    %cst_31 = arith.constant -0.284496725 : f32
    %59 = vector.broadcast %cst_31 : f32 to vector<16x128xf32>
    %60 = arith.addf %59, %58 : vector<16x128xf32>
    %61 = arith.mulf %50, %60 : vector<16x128xf32>
    %cst_32 = arith.constant 0.254829586 : f32
    %62 = vector.broadcast %cst_32 : f32 to vector<16x128xf32>
    %63 = arith.addf %62, %61 : vector<16x128xf32>
    %64 = arith.mulf %50, %63 : vector<16x128xf32>
    %cst_33 = arith.constant 0.000000e+00 : f32
    %65 = vector.broadcast %cst_33 : f32 to vector<16x128xf32>
    %66 = arith.subf %65, %45 : vector<16x128xf32>
    %67 = arith.mulf %66, %45 : vector<16x128xf32>
    %68 = math.exp %67 : vector<16x128xf32>
    %69 = arith.mulf %64, %68 : vector<16x128xf32>
    %cst_34 = arith.constant 1.000000e+00 : f32
    %70 = vector.broadcast %cst_34 : f32 to vector<16x128xf32>
    %71 = arith.subf %70, %69 : vector<16x128xf32>
    %72 = arith.mulf %44, %71 : vector<16x128xf32>
    %cst_35 = arith.constant 1.000000e+00 : f32
    %73 = vector.broadcast %cst_35 : f32 to vector<16x128xf32>
    %74 = arith.addf %73, %72 : vector<16x128xf32>
    %75 = arith.mulf %37, %74 : vector<16x128xf32>
    %76 = arith.truncf %75 : vector<16x128xf32> to vector<16x128xbf16>
    %c0_36 = arith.constant 0 : index
    %c0_37 = arith.constant 0 : index
    %77 = vector.load %arg9[%c0_36, %c0_37] : memref<128x32xbf16, #tpu.memory_space<vmem>>, vector<128x32xbf16>
    %cst_38 = arith.constant dense<0.000000e+00> : vector<16x32xf32>
    %78 = tpu.matmul %76, %77, %cst_38 {dimension_numbers = #tpu.dot_dimension_numbers<[1], [0], [0], [1], [0, 0, 1, 1], [], []>} : vector<16x128xbf16>, vector<128x32xbf16>, vector<16x32xf32> -> vector<16x32xf32>
    %c0_39 = arith.constant 0 : index
    %c0_40 = arith.constant 0 : index
    %79 = vector.load %arg10[%c0_39, %c0_40] : memref<1x32xf32, #tpu.memory_space<vmem>>, vector<1x32xf32>
    %80 = vector.broadcast %79 : vector<1x32xf32> to vector<16x32xf32>
    %81 = arith.addf %78, %80 : vector<16x32xf32>
    %82 = arith.addf %7, %81 : vector<16x32xf32>
    %c0_41 = arith.constant 0 : index
    %c0_42 = arith.constant 0 : index
    %83 = vector.load %arg11[%c0_41, %c0_42] : memref<16x32xf32, #tpu.memory_space<vmem>>, vector<16x32xf32>
    tpu.vector_store %arg11[%c0_41, %c0_42], %82 {strides = array<i32>} : memref<16x32xf32, #tpu.memory_space<vmem>>, vector<16x32xf32>,
    return
  }
  func.func @transform_0(%arg0: i32) -> (i32, i32) {
    %c0_i32 = arith.constant 0 : i32
    %c0_i32_0 = arith.constant 0 : i32
    return %arg0, %c0_i32 : i32, i32
  }
  func.func @transform_1(%arg0: i32) -> (i32, i32) {
    %c0_i32 = arith.constant 0 : i32
    %c0_i32_0 = arith.constant 0 : i32
    return %arg0, %c0_i32 : i32, i32
  }
  func.func @transform_2(%arg0: i32) -> (i32, i32) {
    %c0_i32 = arith.constant 0 : i32
    %c0_i32_0 = arith.constant 0 : i32
    %c0_i32_1 = arith.constant 0 : i32
    return %c0_i32, %c0_i32_0 : i32, i32
  }
  func.func @transform_3(%arg0: i32) -> (i32, i32) {
    %c0_i32 = arith.constant 0 : i32
    %c0_i32_0 = arith.constant 0 : i32
    %c0_i32_1 = arith.constant 0 : i32
    return %c0_i32, %c0_i32_0 : i32, i32
  }
  func.func @transform_4(%arg0: i32) -> (i32, i32) {
    %c0_i32 = arith.constant 0 : i32
    %c0_i32_0 = arith.constant 0 : i32
    %c0_i32_1 = arith.constant 0 : i32
    return %c0_i32, %c0_i32_0 : i32, i32
  }
  func.func @transform_5(%arg0: i32) -> (i32, i32) {
    %c0_i32 = arith.constant 0 : i32
    %c0_i32_0 = arith.constant 0 : i32
    %c0_i32_1 = arith.constant 0 : i32
    return %c0_i32, %c0_i32_0 : i32, i32
  }
  func.func @transform_6(%arg0: i32) -> (i32, i32) {
    %c0_i32 = arith.constant 0 : i32
    %c0_i32_0 = arith.constant 0 : i32
    %c0_i32_1 = arith.constant 0 : i32
    return %c0_i32, %c0_i32_0 : i32, i32
  }
  func.func @transform_7(%arg0: i32) -> (i32, i32) {
    %c0_i32 = arith.constant 0 : i32
    %c0_i32_0 = arith.constant 0 : i32
    %c0_i32_1 = arith.constant 0 : i32
    return %c0_i32, %c0_i32_0 : i32, i32
  }
  func.func @transform_8(%arg0: i32) -> (i32, i32) {
    %c0_i32 = arith.constant 0 : i32
    %c0_i32_0 = arith.constant 0 : i32
    %c0_i32_1 = arith.constant 0 : i32
    return %c0_i32, %c0_i32_0 : i32, i32
  }
  func.func @transform_9(%arg0: i32) -> (i32, i32) {
    %c0_i32 = arith.constant 0 : i32
    %c0_i32_0 = arith.constant 0 : i32
    %c0_i32_1 = arith.constant 0 : i32
    return %c0_i32, %c0_i32_0 : i32, i32
  }
  func.func @transform_10(%arg0: i32) -> (i32, i32) {
    %c0_i32 = arith.constant 0 : i32
    %c0_i32_0 = arith.constant 0 : i32
    return %arg0, %c0_i32 : i32, i32
  }
}

</mosaic_0001>

<llo_original>
// kernel: block_forward.4
$region0: #{block_forward.4}
  #allocation0 [shape = 'u32[]', space=smem, size = 0x4, offset = 0x4, fixed_abs, tag = 'smem constant byte address 0x4 - core index']
  #allocation1 [shape = 'u32[72,128]{1,0:T(1,128)}', space=vmem, size = 0x9000, scoped, tag = 'internal scratch']
  %s0 = inlined_call_operand.vmem [shape: bf16[2,8,96], index: 0, kind: input, shape index: {}]
  %s1 = inlined_call_operand.vmem [shape: bf16[2,8,32], index: 1, kind: output, shape index: {}]
  %s2 = sld [smem:[#allocation0]]
  $region37: #{block_forward.4} parent=0
    _
  %s4 = ssub.s32 1, %s2
  %s5 = scalar_select 0, %s4, %s2
  loop: start=0, step=1, limit=4
  $region2: #{block_forward.4} parent=0 // loop_pre_header
    _
  $region3: #{block_forward.4} parent=0 // loop_header
    %s7 = sphi 0, %s11
    %p8 = scmp.ge.s32.totalorder %s7, 4
    %s17 = sphi 0, %s19
    %s20 = sphi 0, %s17
    %s21 = sphi 0, %s20
    %s37 = sphi 0, %s21
    %s43 = sphi 0, %s45
    %s46 = sphi 0, %s43
    %s47 = sphi 0, %s46
    %s63 = sphi 0, %s47
  $region4: #{block_forward.4} parent=0 // loop_header_branch
    %10 = sbr.rel (%p8) target = $region8
  $region5: #{block_forward.4} parent=0 // loop_body
    %s12 = ssub.s32 %s7, 1
    %s13 = ssub.s32 %s7, 2
    %s14 = sadd.s32 %s7, 1
    %s15 = ssub.s32 %s7, %s14
    %p16 = scmp.eq.s32.totalorder %s15, 0
    %s18 = sadd.s32 %s17, 1
    %s19 = scalar_select %p16, %s17, %s18
    %p22 = pneg %p16
    %p23 = scmp.eq.s32.totalorder %s7, 1
    %p24 = por %p22, %p23
    %p25 = scmp.ne.s32.totalorder %s17, %s20
    %p26 = scmp.eq.s32.totalorder %s7, 0
    %p27 = por %p25, %p26
    %p28 = scmp.ne.s32.totalorder %s17, %s20
    %p29 = scmp.eq.s32.totalorder %s12, 1
    %p30 = por %p28, %p29
    %p31 = scmp.ne.s32.totalorder %s20, %s21
    %p32 = scmp.eq.s32.totalorder %s12, 0
    %p33 = por %p31, %p32
    %p34 = scmp.ne.s32.totalorder %s20, %s21
    %p35 = scmp.eq.s32.totalorder %s13, 1
    %p36 = por %p34, %p35
    %p38 = scmp.ne.s32.totalorder %s21, %s37
    %p39 = scmp.eq.s32.totalorder %s13, 0
    %p40 = por %p38, %p39
    %s41 = ssub.s32 %s7, %s14
    %p42 = scmp.eq.s32.totalorder %s41, 0
    %s44 = sadd.s32 %s43, 1
    %s45 = scalar_select %p42, %s43, %s44
    %p48 = pneg %p42
    %p49 = scmp.eq.s32.totalorder %s7, 1
    %p50 = por %p48, %p49
    %p51 = scmp.ne.s32.totalorder %s43, %s46
    %p52 = scmp.eq.s32.totalorder %s7, 0
    %p53 = por %p51, %p52
    %p54 = scmp.ne.s32.totalorder %s43, %s46
    %p55 = scmp.eq.s32.totalorder %s12, 1
    %p56 = por %p54, %p55
    %p57 = scmp.ne.s32.totalorder %s46, %s47
    %p58 = scmp.eq.s32.totalorder %s12, 0
    %p59 = por %p57, %p58
    %p60 = scmp.ne.s32.totalorder %s46, %s47
    %p61 = scmp.eq.s32.totalorder %s13, 1
    %p62 = por %p60, %p61
    %p64 = scmp.ne.s32.totalorder %s47, %s63
    %p65 = scmp.eq.s32.totalorder %s13, 0
    %p66 = por %p64, %p65
    %p67 = scmp.le.s32.totalorder 1, %s7
    %p68 = scmp.lt.s32.totalorder %s7, 3
    %p69 = pnand %p67, %p68
    %p70 = pneg %p69
    // Predicated region
    $region9: #{block_forward.4} parent=5 // pred_check
      _
    $region10: #{block_forward.4} parent=5 // pred_check_branch
      %72 = sbr.rel (%p69) target = $region12
    $region11: #{block_forward.4} parent=5 // pred_region
      %s73 = ssub.s32 %s7, 1
    $region12: #{block_forward.4} parent=5 // pred_fallthru
      _
    %p74 = scmp.lt.s32.totalorder %s7, 2
    // Predicated region
    $region13: #{block_forward.4} parent=5 // pred_check
      %p75 = pneg %p74
    $region14: #{block_forward.4} parent=5 // pred_check_branch
      %77 = sbr.rel (%p75) target = $region16
    $region15: #{block_forward.4} parent=5 // pred_region
      // Predicated region
      $region17: #{block_forward.4} parent=15 // pred_check
        %p78 = pneg %p27
      $region18: #{block_forward.4} parent=15 // pred_check_branch
        %80 = sbr.rel (%p78) target = $region20
      $region19: #{block_forward.4} parent=15 // pred_region
        %p81 = scmp.lt.s32.totalorder %s7, 1
        %s82 = scalar_select %p81, %s7, 1
        %s83 = smul.addr %s82, 4
        %s84 = scalar_lea.vmem %s0, %s83
      $region20: #{block_forward.4} parent=15 // pred_fallthru
        _
    $region16: #{block_forward.4} parent=5 // pred_fallthru
      _
    %p85 = scmp.le.s32.totalorder 1, %s7
    %p86 = scmp.lt.s32.totalorder %s7, 3
    %p87 = pnand %p85, %p86
    %p88 = pneg %p87
    // Predicated region
    $region21: #{block_forward.4} parent=5 // pred_check
      _
    $region22: #{block_forward.4} parent=5 // pred_check_branch
      %90 = sbr.rel (%p87) target = $region24
    $region23: #{block_forward.4} parent=5 // pred_region
      %s91 = ssub.s32 %s7, 1
      %p92 = scmp.lt.s32.totalorder %s12, 1
      %s93 = scalar_select %p92, %s12, 1
      %s94 = smul.addr %s93, 4
      %s95 = scalar_lea.vmem %s0, %s94
      %p96 = pneg %p33
      %p97 = pneg %p30
      %p98 = pneg %p59
      %p99 = pneg %p56
      %p100 = scmp.lt.s32.totalorder %s12, 1
      %s101 = scalar_select %p100, %s12, 1
      %s102 = smul.addr %s101, 4
      %s103 = scalar_lea.vmem %s1, %s102
      %p104 = scmp.lt.s32.totalorder %s12, 1
      %s105 = scalar_select %p104, %s12, 1
      %s106 = smul.addr %s105, 4
      %s107 = scalar_lea.vmem %s0, %s106
      %p108 = scmp.lt.s32.totalorder %s12, 1
      %s109 = scalar_select %p108, %s12, 1
      %s110 = smul.addr %s109, 4
      %s111 = scalar_lea.vmem %s1, %s110
      %v113 = vld [vmem:[%s107] sm:$0xf]
      %v115 = vunpack.c.l.b16 %v113
      %v116 = vpack.c.b16 %v115, %v115
      %117 = vrot.lane.b32.xlu0 %v116, 96
      %v118 = vpop.permute.xlu0 %117
      %vm119 = vcmask 64512
      %v121 = vsel %vm119, %v113, 0
      %v124 = vsel %vm119, %v118, 0
      %126 = vmatpush.bf16.xpose.msra.mxu0 0
      %127 = vmatpush.bf16.xpose.msra.mxu0 0
      %128 = vmatpush.bf16.xpose.msra.mxu0 0
      %129 = vmatpush.bf16.xpose.msra.mxu0 0
      %130 = vmatpush.bf16.xpose.msra.mxu0 0
      %131 = vmatpush.bf16.xpose.msra.mxu0 0
      %132 = vmatpush.bf16.xpose.msra.mxu0 0
      %133 = vmatpush.bf16.xpose.msra.mxu0 %v124
      %134 = vmatmul.bf16.gmra.mxu0 %v121
      %v135 = vpop.f32.mrf.mxu0
      %v136 = vadd.f32 0.0, %v135
      %v137 = vpop.f32.mrf.mxu0
      %138 = vdwg.mxu0
      %v139 = vmul.f32 %v136, 0.35355338
      %v140 = vsel %vm119, %v139, -inf
      %141 = vmax.xlane.f32.xlu0 %v140
      %v142 = vpop.xlane.xlu0 %141
      %v143 = vsub.f32 %v139, %v142
      %v144 = vmul.f32 %v143, 1.442695
      %v145 = vpow.pop %v144
      %v146 = vsel %vm119, %v145, 0.0
      %147 = vadd.xlane.f32.xlu0 %v146
      %v148 = vpop.xlane.xlu0 %147
      %v149 = vpack.c.bf16 %v145, %v145
      %150 = vrot.lane.b32.xlu0 %v116, 64
      %v151 = vpop.permute.xlu0 %150
      %v153 = vsel %vm119, %v149, 0
      %vm155 = vcmask 1043456
      %v157 = vsel %vm155, %v151, 0
      %159 = vmatpush.bf16.msra.mxu0 0
      %160 = vmatpush.bf16.msra.mxu0 0
      %161 = vmatpush.bf16.msra.mxu0 0
      %162 = vmatpush.bf16.msra.mxu0 0
      %163 = vmatpush.bf16.msra.mxu0 0
      %164 = vmatpush.bf16.msra.mxu0 0
      %165 = vmatpush.bf16.msra.mxu0 0
      %166 = vmatpush.bf16.msra.mxu0 %v157
      %167 = vmatmul.bf16.gmra.mxu0 %v153
      %v168 = vpop.f32.mrf.mxu0
      %v169 = vadd.f32 0.0, %v168
      %v170 = vpop.f32.mrf.mxu0
      %171 = vdwg.mxu0
      %v172 = vrcp.pop %v148
      %v173 = vmul.f32 %v169, %v172
      %v174 = vpack.c.bf16 %v173, %v173
      %175 = vrot.lane.b32.xlu0 %v116, 120
      %v176 = vpop.permute.xlu0 %175
      %177 = vrot.lane.b32.xlu0 %v116, 88
      %v178 = vpop.permute.xlu0 %177
      %v180 = vsel %vm119, %v176, 0
      %v183 = vsel %vm119, %v178, 0
      %185 = vmatpush.bf16.xpose.msra.mxu0 0
      %186 = vmatpush.bf16.xpose.msra.mxu0 0
      %187 = vmatpush.bf16.xpose.msra.mxu0 0
      %188 = vmatpush.bf16.xpose.msra.mxu0 0
      %189 = vmatpush.bf16.xpose.msra.mxu0 0
      %190 = vmatpush.bf16.xpose.msra.mxu0 0
      %191 = vmatpush.bf16.xpose.msra.mxu0 0
      %192 = vmatpush.bf16.xpose.msra.mxu0 %v183
      %193 = vmatmul.bf16.gmra.mxu0 %v180
      %v194 = vpop.f32.mrf.mxu0
      %v195 = vadd.f32 0.0, %v194
      %v196 = vpop.f32.mrf.mxu0
      %197 = vdwg.mxu0
      %v198 = vmul.f32 %v195, 0.35355338
      %v199 = vsel %vm119, %v198, -inf
      %200 = vmax.xlane.f32.xlu0 %v199
      %v201 = vpop.xlane.xlu0 %200
      %v202 = vsub.f32 %v198, %v201
      %v203 = vmul.f32 %v202, 1.442695
      %v204 = vpow.pop %v203
      %v205 = vsel %vm119, %v204, 0.0
      %206 = vadd.xlane.f32.xlu0 %v205
      %v207 = vpop.xlane.xlu0 %206
      %v208 = vpack.c.bf16 %v204, %v204
      %209 = vrot.lane.b32.xlu0 %v116, 56
      %v210 = vpop.permute.xlu0 %209
      %v212 = vsel %vm119, %v208, 0
      %v215 = vsel %vm155, %v210, 0
      %217 = vmatpush.bf16.msra.mxu0 0
      %218 = vmatpush.bf16.msra.mxu0 0
      %219 = vmatpush.bf16.msra.mxu0 0
      %220 = vmatpush.bf16.msra.mxu0 0
      %221 = vmatpush.bf16.msra.mxu0 0
      %222 = vmatpush.bf16.msra.mxu0 0
      %223 = vmatpush.bf16.msra.mxu0 0
      %224 = vmatpush.bf16.msra.mxu0 %v215
      %225 = vmatmul.bf16.gmra.mxu0 %v212
      %v226 = vpop.f32.mrf.mxu0
      %v227 = vadd.f32 0.0, %v226
      %v228 = vpop.f32.mrf.mxu0
      %229 = vdwg.mxu0
      %v230 = vrcp.pop %v207
      %v231 = vmul.f32 %v227, %v230
      %v232 = vpack.c.bf16 %v231, %v231
      %233 = vrot.lane.b32.xlu0 %v116, 112
      %v234 = vpop.permute.xlu0 %233
      %235 = vrot.lane.b32.xlu0 %v116, 80
      %v236 = vpop.permute.xlu0 %235
      %v238 = vsel %vm119, %v234, 0
      %v241 = vsel %vm119, %v236, 0
      %243 = vmatpush.bf16.xpose.msra.mxu0 0
      %244 = vmatpush.bf16.xpose.msra.mxu0 0
      %245 = vmatpush.bf16.xpose.msra.mxu0 0
      %246 = vmatpush.bf16.xpose.msra.mxu0 0
      %247 = vmatpush.bf16.xpose.msra.mxu0 0
      %248 = vmatpush.bf16.xpose.msra.mxu0 0
      %249 = vmatpush.bf16.xpose.msra.mxu0 0
      %250 = vmatpush.bf16.xpose.msra.mxu0 %v241
      %251 = vmatmul.bf16.gmra.mxu0 %v238
      %v252 = vpop.f32.mrf.mxu0
      %v253 = vadd.f32 0.0, %v252
      %v254 = vpop.f32.mrf.mxu0
      %255 = vdwg.mxu0
      %v256 = vmul.f32 %v253, 0.35355338
      %v257 = vsel %vm119, %v256, -inf
      %258 = vmax.xlane.f32.xlu0 %v257
      %v259 = vpop.xlane.xlu0 %258
      %v260 = vsub.f32 %v256, %v259
      %v261 = vmul.f32 %v260, 1.442695
      %v262 = vpow.pop %v261
      %v263 = vsel %vm119, %v262, 0.0
      %264 = vadd.xlane.f32.xlu0 %v263
      %v265 = vpop.xlane.xlu0 %264
      %v266 = vpack.c.bf16 %v262, %v262
      %267 = vrot.lane.b32.xlu0 %v116, 48
      %v268 = vpop.permute.xlu0 %267
      %v270 = vsel %vm119, %v266, 0
      %v273 = vsel %vm155, %v268, 0
      %275 = vmatpush.bf16.msra.mxu0 0
      %276 = vmatpush.bf16.msra.mxu0 0
      %277 = vmatpush.bf16.msra.mxu0 0
      %278 = vmatpush.bf16.msra.mxu0 0
      %279 = vmatpush.bf16.msra.mxu0 0
      %280 = vmatpush.bf16.msra.mxu0 0
      %281 = vmatpush.bf16.msra.mxu0 0
      %282 = vmatpush.bf16.msra.mxu0 %v273
      %283 = vmatmul.bf16.gmra.mxu0 %v270
      %v284 = vpop.f32.mrf.mxu0
      %v285 = vadd.f32 0.0, %v284
      %v286 = vpop.f32.mrf.mxu0
      %287 = vdwg.mxu0
      %v288 = vrcp.pop %v265
      %v289 = vmul.f32 %v285, %v288
      %v290 = vpack.c.bf16 %v289, %v289
      %291 = vrot.lane.b32.xlu0 %v116, 104
      %v292 = vpop.permute.xlu0 %291
      %293 = vrot.lane.b32.xlu0 %v116, 72
      %v294 = vpop.permute.xlu0 %293
      %v296 = vsel %vm119, %v292, 0
      %v299 = vsel %vm119, %v294, 0
      %301 = vmatpush.bf16.xpose.msra.mxu0 0
      %302 = vmatpush.bf16.xpose.msra.mxu0 0
      %303 = vmatpush.bf16.xpose.msra.mxu0 0
      %304 = vmatpush.bf16.xpose.msra.mxu0 0
      %305 = vmatpush.bf16.xpose.msra.mxu0 0
      %306 = vmatpush.bf16.xpose.msra.mxu0 0
      %307 = vmatpush.bf16.xpose.msra.mxu0 0
      %308 = vmatpush.bf16.xpose.msra.mxu0 %v299
      %309 = vmatmul.bf16.gmra.mxu0 %v296
      %v310 = vpop.f32.mrf.mxu0
      %v311 = vadd.f32 0.0, %v310
      %v312 = vpop.f32.mrf.mxu0
      %313 = vdwg.mxu0
      %v314 = vmul.f32 %v311, 0.35355338
      %v315 = vsel %vm119, %v314, -inf
      %316 = vmax.xlane.f32.xlu0 %v315
      %v317 = vpop.xlane.xlu0 %316
      %v318 = vsub.f32 %v314, %v317
      %v319 = vmul.f32 %v318, 1.442695
      %v320 = vpow.pop %v319
      %v321 = vsel %vm119, %v320, 0.0
      %322 = vadd.xlane.f32.xlu0 %v321
      %v323 = vpop.xlane.xlu0 %322
      %v324 = vpack.c.bf16 %v320, %v320
      %325 = vrot.lane.b32.xlu0 %v116, 40
      %v326 = vpop.permute.xlu0 %325
      %v328 = vsel %vm119, %v324, 0
      %v331 = vsel %vm155, %v326, 0
      %333 = vmatpush.bf16.msra.mxu0 0
      %334 = vmatpush.bf16.msra.mxu0 0
      %335 = vmatpush.bf16.msra.mxu0 0
      %336 = vmatpush.bf16.msra.mxu0 0
      %337 = vmatpush.bf16.msra.mxu0 0
      %338 = vmatpush.bf16.msra.mxu0 0
      %339 = vmatpush.bf16.msra.mxu0 0
      %340 = vmatpush.bf16.msra.mxu0 %v331
      %341 = vmatmul.bf16.gmra.mxu0 %v328
      %v342 = vpop.f32.mrf.mxu0
      %v343 = vadd.f32 0.0, %v342
      %v344 = vpop.f32.mrf.mxu0
      %345 = vdwg.mxu0
      %v346 = vrcp.pop %v323
      %v347 = vmul.f32 %v343, %v346
      %v348 = vpack.c.bf16 %v347, %v347
      %v350 = vunpack.c.l.b16 %v232
      %v351 = vpack.c.b16 %v350, %v350
      %352 = vrot.lane.b32.xlu0 %v351, 8
      %v353 = vpop.permute.xlu0 %352
      %v355 = vunpack.c.l.b16 %v290
      %v356 = vpack.c.b16 %v355, %v355
      %357 = vrot.lane.b32.xlu0 %v356, 16
      %v358 = vpop.permute.xlu0 %357
      %v360 = vunpack.c.l.b16 %v348
      %v361 = vpack.c.b16 %v360, %v360
      %362 = vrot.lane.b32.xlu0 %v361, 24
      %v363 = vpop.permute.xlu0 %362
      %v366 = vsel %vm119, %v174, %v353
      %vm367 = vcmask 130048
      %v369 = vsel %vm367, %v366, %v358
      %vm370 = vcmask 195584
      %v372 = vsel %vm370, %v369, %v363
      %vm374 = vcmask 257024
      %375 = vst.msk [vmem:[%s111] sm:$0xf] %vm374, %v372
      %p376 = scmp.lt.s32.totalorder %s12, 1
      %s377 = scalar_select %p376, %s12, 1
      %s378 = smul.addr %s377, 4
      %s379 = scalar_lea.vmem %s1, %s378
      // Predicated region
      $region25: #{block_forward.4} parent=23 // pred_check
        %p380 = pneg %p56
      $region26: #{block_forward.4} parent=23 // pred_check_branch
        %382 = sbr.rel (%p380) target = $region28
      $region27: #{block_forward.4} parent=23 // pred_region
        _
      $region28: #{block_forward.4} parent=23 // pred_fallthru
        _
    $region24: #{block_forward.4} parent=5 // pred_fallthru
      _
    %p383 = scmp.le.s32.totalorder 2, %s7
    // Predicated region
    $region29: #{block_forward.4} parent=5 // pred_check
      %p384 = pneg %p383
    $region30: #{block_forward.4} parent=5 // pred_check_branch
      %386 = sbr.rel (%p384) target = $region32
    $region31: #{block_forward.4} parent=5 // pred_region
      %s387 = ssub.s32 %s7, 2
      // Predicated region
      $region33: #{block_forward.4} parent=31 // pred_check
        %p388 = pneg %p62
      $region34: #{block_forward.4} parent=31 // pred_check_branch
        %390 = sbr.rel (%p388) target = $region36
      $region35: #{block_forward.4} parent=31 // pred_region
        %p391 = scmp.lt.s32.totalorder %s13, 1
        %s392 = scalar_select %p391, %s13, 1
        %s393 = smul.addr %s392, 4
        %s394 = scalar_lea.vmem %s1, %s393
      $region36: #{block_forward.4} parent=31 // pred_fallthru
        _
    $region32: #{block_forward.4} parent=5 // pred_fallthru
      _
  $region6: #{block_forward.4} parent=0 // loop_footer
    %s11 = sadd.s32 1, %s7
  $region7: #{block_forward.4} parent=0 // loop_footer_branch
    %6 = sbr.rel target = $region3
  $region8: #{block_forward.4} parent=0 // loop_exit
    _

// kernel: block_forward.3
$region0: #{block_forward.3}
  #allocation0 [shape = 'u32[]', space=smem, size = 0x4, offset = 0x4, fixed_abs, tag = 'smem constant byte address 0x4 - core index']
  #allocation1 [shape = 'u32[72,128]{1,0:T(1,128)}', space=vmem, size = 0x9000, scoped, tag = 'internal scratch']
  %s0 = inlined_call_operand.vmem [shape: f32[16,32], index: 0, kind: input, shape index: {}]
  %s1 = inlined_call_operand.vmem [shape: f32[1,32], index: 1, kind: input, shape index: {}]
  %s2 = inlined_call_operand.vmem [shape: f32[1,32], index: 2, kind: input, shape index: {}]
  %s3 = inlined_call_operand.vmem [shape: bf16[32,96], index: 3, kind: input, shape index: {}]
  %s4 = inlined_call_operand.vmem [shape: bf16[16,96], index: 4, kind: output, shape index: {}]
  %s5 = sld [smem:[#allocation0]]
  $region26: #{block_forward.3} parent=0
    _
  %s7 = ssub.s32 1, %s5
  %s8 = scalar_select 0, %s7, %s5
  // Predicated region
  $region2: #{block_forward.3} parent=0 // pred_check
    _
  $region3: #{block_forward.3} parent=0 // pred_check_branch
    %10 = sbr.rel (0) target = $region5
  $region4: #{block_forward.3} parent=0 // pred_region
    _
  $region5: #{block_forward.3} parent=0 // pred_fallthru
    _
  // Predicated region
  $region6: #{block_forward.3} parent=0 // pred_check
    _
  $region7: #{block_forward.3} parent=0 // pred_check_branch
    %12 = sbr.rel (0) target = $region9
  $region8: #{block_forward.3} parent=0 // pred_region
    _
  $region9: #{block_forward.3} parent=0 // pred_fallthru
    _
  // Predicated region
  $region10: #{block_forward.3} parent=0 // pred_check
    _
  $region11: #{block_forward.3} parent=0 // pred_check_branch
    %14 = sbr.rel (0) target = $region13
  $region12: #{block_forward.3} parent=0 // pred_region
    _
  $region13: #{block_forward.3} parent=0 // pred_fallthru
    _
  // Predicated region
  $region14: #{block_forward.3} parent=0 // pred_check
    _
  $region15: #{block_forward.3} parent=0 // pred_check_branch
    %16 = sbr.rel (0) target = $region17
  $region16: #{block_forward.3} parent=0 // pred_region
    _
  $region17: #{block_forward.3} parent=0 // pred_fallthru
    _
  %v18 = vld [vmem:[%s0] sm:$0xff]
  %v19 = vld [vmem:[%s0 + $0x8] sm:$0xff]
  %v20 = vld [vmem:[%s1] sm:$0x1]
  %v21 = vld [vmem:[%s2] sm:$0x1]
  %vm22 = vcmask 261120
  %v23 = vsel %vm22, %v18, 0.0
  %24 = vadd.xlane.f32.xlu0 %v23
  %v25 = vpop.xlane.xlu0 %24
  %v26 = vsel %vm22, %v19, 0.0
  %27 = vadd.xlane.f32.xlu0 %v26
  %v28 = vpop.xlane.xlu0 %27
  %v29 = vrcp.pop 32.0
  %v30 = vmul.f32 32.0, %v29
  %v31 = vsub.f32 1.0, %v30
  %v32 = vmul.f32 %v29, %v31
  %v33 = vadd.f32 %v29, %v32
  %vm34 = vweird.f32 %v29
  %v35 = vsel %vm34, %v29, %v33
  %v36 = vmul.f32 %v25, %v35
  %v37 = vmul.f32 %v28, %v35
  %v38 = vsub.f32 %v18, %v36
  %v39 = vsub.f32 %v19, %v37
  %v40 = vmul.f32 %v38, %v38
  %v41 = vmul.f32 %v39, %v39
  %v42 = vsel %vm22, %v40, 0.0
  %43 = vadd.xlane.f32.xlu0 %v42
  %v44 = vpop.xlane.xlu0 %43
  %v45 = vsel %vm22, %v41, 0.0
  %46 = vadd.xlane.f32.xlu0 %v45
  %v47 = vpop.xlane.xlu0 %46
  %v48 = vmul.f32 %v44, %v35
  %v49 = vmul.f32 %v47, %v35
  %v50 = vadd.f32 %v48, 1e-05
  %v51 = vadd.f32 %v49, 1e-05
  %v52 = vrsqrt.pop %v50
  %v53 = vmul.f32 %v52, %v50
  %v54 = vmul.f32 %v53, %v52
  %v55 = vmul.f32 0.5, %v54
  %v56 = vsub.f32 1.5, %v55
  %v57 = vmul.f32 %v52, %v56
  %vm58 = vweird.f32 %v50
  %vm59 = vweird.f32 %v52
  %vm60 = vmor %vm58, %vm59
  %v61 = vsel %vm60, %v52, %v57
  %v62 = vrsqrt.pop %v51
  %v63 = vmul.f32 %v62, %v51
  %v64 = vmul.f32 %v63, %v62
  %v65 = vmul.f32 0.5, %v64
  %v66 = vsub.f32 1.5, %v65
  %v67 = vmul.f32 %v62, %v66
  %vm68 = vweird.f32 %v51
  %vm69 = vweird.f32 %v62
  %vm70 = vmor %vm68, %vm69
  %v71 = vsel %vm70, %v62, %v67
  %v72 = vmul.f32 %v38, %v61
  %v73 = vmul.f32 %v39, %v71
  %v75 = vperm.slane %v20, 0
  %v77 = vmul.f32 %v72, %v75
  %v78 = vmul.f32 %v73, %v75
  %v80 = vperm.slane %v21, 0
  %v82 = vadd.f32 %v77, %v80
  %v83 = vadd.f32 %v78, %v80
  %v84 = vpack.c.bf16 %v83, %v82
  %v85 = vld [vmem:[%s3] sm:$0xf]
  %v86 = vld [vmem:[%s3 + $0x4] sm:$0xf]
  %v87 = vld [vmem:[%s3 + $0x8] sm:$0xf]
  %v88 = vld [vmem:[%s3 + $0xc] sm:$0xf]
  %v93 = vunpack.c.l.b16 %v85
  %v94 = vunpack.c.l.b16 %v86
  %v95 = vunpack.c.l.b16 %v87
  %v96 = vunpack.c.l.b16 %v88
  %v97 = vpack.c.b16 %v94, %v93
  %v98 = vpack.c.b16 %v96, %v95
  %v102 = vsel %vm22, %v84, 0
  %104 = vmatpush.bf16.msra.mxu0 0
  %105 = vmatpush.bf16.msra.mxu0 0
  %106 = vmatpush.bf16.msra.mxu0 0
  %107 = vmatpush.bf16.msra.mxu0 0
  %108 = vmatpush.bf16.msra.mxu0 0
  %109 = vmatpush.bf16.msra.mxu0 0
  %110 = vmatpush.bf16.msra.mxu0 %v98
  %111 = vmatpush.bf16.msra.mxu0 %v97
  %112 = vmatmul.bf16.gmra.mxu0 %v102
  %v113 = vpop.f32.mrf.mxu0
  %v114 = vadd.f32 0.0, %v113
  %v115 = vpop.f32.mrf.mxu0
  %v116 = vadd.f32 0.0, %v115
  %117 = vdwg.mxu0
  %v118 = vpack.c.bf16 %v114, %v114
  %v119 = vpack.c.bf16 %v116, %v116
  %vm120 = vcmask 781312
  %121 = vst.msk [vmem:[%s4] sm:$0xf] %vm120, %v118
  %122 = vst.msk [vmem:[%s4 + $0x4] sm:$0xf] %vm120, %v119
  // Predicated region
  $region18: #{block_forward.3} parent=0 // pred_check
    _
  $region19: #{block_forward.3} parent=0 // pred_check_branch
    %124 = sbr.rel (0) target = $region21
  $region20: #{block_forward.3} parent=0 // pred_region
    _
  $region21: #{block_forward.3} parent=0 // pred_fallthru
    _
  // Predicated region
  $region22: #{block_forward.3} parent=0 // pred_check
    _
  $region23: #{block_forward.3} parent=0 // pred_check_branch
    %126 = sbr.rel (0) target = $region25
  $region24: #{block_forward.3} parent=0 // pred_region
    _
  $region25: #{block_forward.3} parent=0 // pred_fallthru
    _

// kernel: block_forward.5
$region0: #{block_forward.5}
  #allocation0 [shape = 'u32[]', space=smem, size = 0x4, offset = 0x4, fixed_abs, tag = 'smem constant byte address 0x4 - core index']
  #allocation1 [shape = 'u32[72,128]{1,0:T(1,128)}', space=vmem, size = 0x9000, scoped, tag = 'internal scratch']
  %s0 = inlined_call_operand.vmem [shape: f32[16,32], index: 0, kind: input, shape index: {}]
  %s1 = inlined_call_operand.vmem [shape: bf16[16,32], index: 1, kind: input, shape index: {}]
  %s2 = inlined_call_operand.vmem [shape: bf16[32,32], index: 2, kind: input, shape index: {}]
  %s3 = inlined_call_operand.vmem [shape: f32[1,32], index: 3, kind: input, shape index: {}]
  %s4 = inlined_call_operand.vmem [shape: f32[1,32], index: 4, kind: input, shape index: {}]
  %s5 = inlined_call_operand.vmem [shape: f32[1,32], index: 5, kind: input, shape index: {}]
  %s6 = inlined_call_operand.vmem [shape: bf16[32,128], index: 6, kind: input, shape index: {}]
  %s7 = inlined_call_operand.vmem [shape: f32[1,128], index: 7, kind: input, shape index: {}]
  %s8 = inlined_call_operand.vmem [shape: bf16[128,32], index: 8, kind: input, shape index: {}]
  %s9 = inlined_call_operand.vmem [shape: f32[1,32], index: 9, kind: input, shape index: {}]
  %s10 = inlined_call_operand.hbm [shape: f32[16,32], index: 10, kind: output, shape index: {}]
  %s11 = sld [smem:[#allocation0]]
  $region50: #{block_forward.5} parent=0
    _
  %s13 = ssub.s32 1, %s11
  %s14 = scalar_select 0, %s13, %s11
  $region1: #{block_forward.5} parent=0
    #allocation2 [shape = 'u8[8192]{0}', space=vmem, size = 0x2000, scoped, tag = 'output window, operand 0, single buffered']
    #allocation3 [shape = 's32[1]{0}', space=sflag, size = 0x4, scoped, tag = 'scoped memory for block_forward.5']
    %15 = vsyncpa [#allocation3], 0
    // Predicated region
    $region2: #{block_forward.5} parent=1 // pred_check
      _
    $region3: #{block_forward.5} parent=1 // pred_check_branch
      %17 = sbr.rel (0) target = $region5
    $region4: #{block_forward.5} parent=1 // pred_region
      _
    $region5: #{block_forward.5} parent=1 // pred_fallthru
      _
    // Predicated region
    $region6: #{block_forward.5} parent=1 // pred_check
      _
    $region7: #{block_forward.5} parent=1 // pred_check_branch
      %19 = sbr.rel (0) target = $region9
    $region8: #{block_forward.5} parent=1 // pred_region
      _
    $region9: #{block_forward.5} parent=1 // pred_fallthru
      _
    // Predicated region
    $region10: #{block_forward.5} parent=1 // pred_check
      _
    $region11: #{block_forward.5} parent=1 // pred_check_branch
      %21 = sbr.rel (0) target = $region13
    $region12: #{block_forward.5} parent=1 // pred_region
      _
    $region13: #{block_forward.5} parent=1 // pred_fallthru
      _
    // Predicated region
    $region14: #{block_forward.5} parent=1 // pred_check
      _
    $region15: #{block_forward.5} parent=1 // pred_check_branch
      %23 = sbr.rel (0) target = $region17
    $region16: #{block_forward.5} parent=1 // pred_region
      _
    $region17: #{block_forward.5} parent=1 // pred_fallthru
      _
    // Predicated region
    $region18: #{block_forward.5} parent=1 // pred_check
      _
    $region19: #{block_forward.5} parent=1 // pred_check_branch
      %25 = sbr.rel (0) target = $region21
    $region20: #{block_forward.5} parent=1 // pred_region
      _
    $region21: #{block_forward.5} parent=1 // pred_fallthru
      _
    // Predicated region
    $region22: #{block_forward.5} parent=1 // pred_check
      _
    $region23: #{block_forward.5} parent=1 // pred_check_branch
      %27 = sbr.rel (0) target = $region25
    $region24: #{block_forward.5} parent=1 // pred_region
      _
    $region25: #{block_forward.5} parent=1 // pred_fallthru
      _
    // Predicated region
    $region26: #{block_forward.5} parent=1 // pred_check
      _
    $region27: #{block_forward.5} parent=1 // pred_check_branch
      %29 = sbr.rel (0) target = $region29
    $region28: #{block_forward.5} parent=1 // pred_region
      _
    $region29: #{block_forward.5} parent=1 // pred_fallthru
      _
    // Predicated region
    $region30: #{block_forward.5} parent=1 // pred_check
      _
    $region31: #{block_forward.5} parent=1 // pred_check_branch
      %31 = sbr.rel (0) target = $region33
    $region32: #{block_forward.5} parent=1 // pred_region
      _
    $region33: #{block_forward.5} parent=1 // pred_fallthru
      _
    // Predicated region
    $region34: #{block_forward.5} parent=1 // pred_check
      _
    $region35: #{block_forward.5} parent=1 // pred_check_branch
      %33 = sbr.rel (0) target = $region37
    $region36: #{block_forward.5} parent=1 // pred_region
      _
    $region37: #{block_forward.5} parent=1 // pred_fallthru
      _
    // Predicated region
    $region38: #{block_forward.5} parent=1 // pred_check
      _
    $region39: #{block_forward.5} parent=1 // pred_check_branch
      %35 = sbr.rel (0) target = $region41
    $region40: #{block_forward.5} parent=1 // pred_region
      _
    $region41: #{block_forward.5} parent=1 // pred_fallthru
      _
    %v37 = vld [vmem:[%s0] sm:$0xff]
    %v38 = vld [vmem:[%s0 + $0x8] sm:$0xff]
    %v39 = vld [vmem:[%s1] sm:$0xf]
    %v40 = vld [vmem:[%s1 + $0x4] sm:$0xf]
    %v41 = vld [vmem:[%s2] sm:$0xf]
    %v42 = vld [vmem:[%s2 + $0x4] sm:$0xf]
    %v43 = vld [vmem:[%s2 + $0x8] sm:$0xf]
    %v44 = vld [vmem:[%s2 + $0xc] sm:$0xf]
    %v45 = vld [vmem:[%s3] sm:$0x1]
    %v47 = vperm.slane %v45, 0
    %v51 = vunpack.c.l.b16 %v39
    %v52 = vunpack.c.l.b16 %v40
    %v53 = vpack.c.b16 %v52, %v51
    %v58 = vunpack.c.l.b16 %v41
    %v59 = vunpack.c.l.b16 %v42
    %v60 = vunpack.c.l.b16 %v43
    %v61 = vunpack.c.l.b16 %v44
    %v62 = vpack.c.b16 %v59, %v58
    %v63 = vpack.c.b16 %v61, %v60
    %vm66 = vcmask 261120
    %v68 = vsel %vm66, %v53, 0
    %70 = vmatpush.bf16.msra.mxu0 0
    %71 = vmatpush.bf16.msra.mxu0 0
    %72 = vmatpush.bf16.msra.mxu0 0
    %73 = vmatpush.bf16.msra.mxu0 0
    %74 = vmatpush.bf16.msra.mxu0 0
    %75 = vmatpush.bf16.msra.mxu0 0
    %76 = vmatpush.bf16.msra.mxu0 %v63
    %77 = vmatpush.bf16.msra.mxu0 %v62
    %78 = vmatmul.bf16.gmra.mxu0 %v68
    %v79 = vpop.f32.mrf.mxu0
    %v80 = vadd.f32 %v47, %v79
    %v81 = vpop.f32.mrf.mxu0
    %v82 = vadd.f32 %v47, %v81
    %83 = vdwg.mxu0
    %v84 = vadd.f32 %v37, %v80
    %v85 = vadd.f32 %v38, %v82
    %v86 = vld [vmem:[%s4] sm:$0x1]
    %v87 = vld [vmem:[%s5] sm:$0x1]
    %v88 = vsel %vm66, %v84, 0.0
    %89 = vadd.xlane.f32.xlu0 %v88
    %v90 = vpop.xlane.xlu0 %89
    %v91 = vsel %vm66, %v85, 0.0
    %92 = vadd.xlane.f32.xlu0 %v91
    %v93 = vpop.xlane.xlu0 %92
    %v94 = vrcp.pop 32.0
    %v95 = vmul.f32 32.0, %v94
    %v96 = vsub.f32 1.0, %v95
    %v97 = vmul.f32 %v94, %v96
    %v98 = vadd.f32 %v94, %v97
    %vm99 = vweird.f32 %v94
    %v100 = vsel %vm99, %v94, %v98
    %v101 = vmul.f32 %v90, %v100
    %v102 = vmul.f32 %v93, %v100
    %v103 = vsub.f32 %v84, %v101
    %v104 = vsub.f32 %v85, %v102
    %v105 = vmul.f32 %v103, %v103
    %v106 = vmul.f32 %v104, %v104
    %v107 = vsel %vm66, %v105, 0.0
    %108 = vadd.xlane.f32.xlu0 %v107
    %v109 = vpop.xlane.xlu0 %108
    %v110 = vsel %vm66, %v106, 0.0
    %111 = vadd.xlane.f32.xlu0 %v110
    %v112 = vpop.xlane.xlu0 %111
    %v113 = vmul.f32 %v109, %v100
    %v114 = vmul.f32 %v112, %v100
    %v115 = vadd.f32 %v113, 1e-05
    %v116 = vadd.f32 %v114, 1e-05
    %v117 = vrsqrt.pop %v115
    %v118 = vmul.f32 %v117, %v115
    %v119 = vmul.f32 %v118, %v117
    %v120 = vmul.f32 0.5, %v119
    %v121 = vsub.f32 1.5, %v120
    %v122 = vmul.f32 %v117, %v121
    %vm123 = vweird.f32 %v115
    %vm124 = vweird.f32 %v117
    %vm125 = vmor %vm123, %vm124
    %v126 = vsel %vm125, %v117, %v122
    %v127 = vrsqrt.pop %v116
    %v128 = vmul.f32 %v127, %v116
    %v129 = vmul.f32 %v128, %v127
    %v130 = vmul.f32 0.5, %v129
    %v131 = vsub.f32 1.5, %v130
    %v132 = vmul.f32 %v127, %v131
    %vm133 = vweird.f32 %v116
    %vm134 = vweird.f32 %v127
    %vm135 = vmor %vm133, %vm134
    %v136 = vsel %vm135, %v127, %v132
    %v137 = vmul.f32 %v103, %v126
    %v138 = vmul.f32 %v104, %v136
    %v140 = vperm.slane %v86, 0
    %v142 = vmul.f32 %v137, %v140
    %v143 = vmul.f32 %v138, %v140
    %v145 = vperm.slane %v87, 0
    %v147 = vadd.f32 %v142, %v145
    %v148 = vadd.f32 %v143, %v145
    %v149 = vpack.c.bf16 %v148, %v147
    %v150 = vld [vmem:[%s6] sm:$0xf]
    %v151 = vld [vmem:[%s6 + $0x4] sm:$0xf]
    %v152 = vld [vmem:[%s6 + $0x8] sm:$0xf]
    %v153 = vld [vmem:[%s6 + $0xc] sm:$0xf]
    %v154 = vld [vmem:[%s7] sm:$0x1]
    %v156 = vperm.slane %v154, 0
    %v162 = vunpack.c.l.b16 %v150
    %v163 = vunpack.c.l.b16 %v151
    %v164 = vunpack.c.l.b16 %v152
    %v165 = vunpack.c.l.b16 %v153
    %v166 = vpack.c.b16 %v163, %v162
    %v167 = vpack.c.b16 %v165, %v164
    %v171 = vsel %vm66, %v149, 0
    %173 = vmatpush.bf16.msra.mxu0 0
    %174 = vmatpush.bf16.msra.mxu0 0
    %175 = vmatpush.bf16.msra.mxu0 0
    %176 = vmatpush.bf16.msra.mxu0 0
    %177 = vmatpush.bf16.msra.mxu0 0
    %178 = vmatpush.bf16.msra.mxu0 0
    %179 = vmatpush.bf16.msra.mxu0 %v167
    %180 = vmatpush.bf16.msra.mxu0 %v166
    %181 = vmatmul.bf16.gmra.mxu0 %v171
    %v182 = vpop.f32.mrf.mxu0
    %v183 = vadd.f32 %v156, %v182
    %v184 = vpop.f32.mrf.mxu0
    %v185 = vadd.f32 %v156, %v184
    %186 = vdwg.mxu0
    %v187 = vmul.f32 %v183, 0.5
    %v188 = vmul.f32 %v185, 0.5
    %v189 = vmul.f32 %v183, 0.70710677
    %v190 = vmul.f32 %v185, 0.70710677
    %vm191 = vcmp.ge.f32.partialorder %v189, 0.0
    %vm192 = vcmp.ge.f32.partialorder %v190, 0.0
    %v193 = vsel %vm191, 1.0, -1.0
    %v194 = vsel %vm192, 1.0, -1.0
    %v195 = vand.u32 2147483647, %v189
    %v196 = vand.u32 2147483647, %v190
    %v197 = vmul.f32 %v195, 0.3275911
    %v198 = vmul.f32 %v196, 0.3275911
    %v199 = vadd.f32 %v197, 1.0
    %v200 = vadd.f32 %v198, 1.0
    %v201 = vrcp.pop %v199
    %v202 = vrcp.pop %v200
    %v203 = vmul.f32 %v201, 1.0614054
    %v204 = vmul.f32 %v202, 1.0614054
    %v205 = vadd.f32 %v203, -1.4531521
    %v206 = vadd.f32 %v204, -1.4531521
    %v207 = vmul.f32 %v201, %v205
    %v208 = vmul.f32 %v202, %v206
    %v209 = vadd.f32 %v207, 1.4214138
    %v210 = vadd.f32 %v208, 1.4214138
    %v211 = vmul.f32 %v201, %v209
    %v212 = vmul.f32 %v202, %v210
    %v213 = vadd.f32 %v211, -0.28449672
    %v214 = vadd.f32 %v212, -0.28449672
    %v215 = vmul.f32 %v201, %v213
    %v216 = vmul.f32 %v202, %v214
    %v217 = vadd.f32 %v215, 0.2548296
    %v218 = vadd.f32 %v216, 0.2548296
    %v219 = vmul.f32 %v201, %v217
    %v220 = vmul.f32 %v202, %v218
    %v221 = vsub.f32 0.0, %v195
    %v222 = vsub.f32 0.0, %v196
    %v223 = vmul.f32 %v221, %v195
    %v224 = vmul.f32 %v222, %v196
    %v225 = vmul.f32 %v223, 1.442695
    %v226 = vpow.pop %v225
    %v227 = vmul.f32 %v224, 1.442695
    %v228 = vpow.pop %v227
    %v229 = vmul.f32 %v219, %v226
    %v230 = vmul.f32 %v220, %v228
    %v231 = vsub.f32 1.0, %v229
    %v232 = vsub.f32 1.0, %v230
    %v233 = vmul.f32 %v193, %v231
    %v234 = vmul.f32 %v194, %v232
    %v235 = vadd.f32 %v233, 1.0
    %v236 = vadd.f32 %v234, 1.0
    %v237 = vmul.f32 %v187, %v235
    %v238 = vmul.f32 %v188, %v236
    %v239 = vpack.c.bf16 %v238, %v237
    %v240 = vld [vmem:[%s8] sm:$0xf]
    %v241 = vld [vmem:[%s8 + $0x4] sm:$0xf]
    %v242 = vld [vmem:[%s8 + $0x8] sm:$0xf]
    %v243 = vld [vmem:[%s8 + $0xc] sm:$0xf]
    %v244 = vld [vmem:[%s8 + $0x10] sm:$0xf]
    %v245 = vld [vmem:[%s8 + $0x14] sm:$0xf]
    %v246 = vld [vmem:[%s8 + $0x18] sm:$0xf]
    %v247 = vld [vmem:[%s8 + $0x1c] sm:$0xf]
    %v248 = vld [vmem:[%s8 + $0x20] sm:$0xf]
    %v249 = vld [vmem:[%s8 + $0x24] sm:$0xf]
    %v250 = vld [vmem:[%s8 + $0x28] sm:$0xf]
    %v251 = vld [vmem:[%s8 + $0x2c] sm:$0xf]
    %v252 = vld [vmem:[%s8 + $0x30] sm:$0xf]
    %v253 = vld [vmem:[%s8 + $0x34] sm:$0xf]
    %v254 = vld [vmem:[%s8 + $0x38] sm:$0xf]
    %v255 = vld [vmem:[%s8 + $0x3c] sm:$0xf]
    %v256 = vld [vmem:[%s9] sm:$0x1]
    %v258 = vperm.slane %v256, 0
    %v276 = vunpack.c.l.b16 %v240
    %v277 = vunpack.c.l.b16 %v241
    %v278 = vunpack.c.l.b16 %v242
    %v279 = vunpack.c.l.b16 %v243
    %v280 = vunpack.c.l.b16 %v244
    %v281 = vunpack.c.l.b16 %v245
    %v282 = vunpack.c.l.b16 %v246
    %v283 = vunpack.c.l.b16 %v247
    %v284 = vunpack.c.l.b16 %v248
    %v285 = vunpack.c.l.b16 %v249
    %v286 = vunpack.c.l.b16 %v250
    %v287 = vunpack.c.l.b16 %v251
    %v288 = vunpack.c.l.b16 %v252
    %v289 = vunpack.c.l.b16 %v253
    %v290 = vunpack.c.l.b16 %v254
    %v291 = vunpack.c.l.b16 %v255
    %v292 = vpack.c.b16 %v277, %v276
    %v293 = vpack.c.b16 %v279, %v278
    %v294 = vpack.c.b16 %v281, %v280
    %v295 = vpack.c.b16 %v283, %v282
    %v296 = vpack.c.b16 %v285, %v284
    %v297 = vpack.c.b16 %v287, %v286
    %v298 = vpack.c.b16 %v289, %v288
    %v299 = vpack.c.b16 %v291, %v290
    %308 = vmatpush.bf16.msra.mxu0 %v299
    %309 = vmatpush.bf16.msra.mxu0 %v298
    %310 = vmatpush.bf16.msra.mxu0 %v297
    %311 = vmatpush.bf16.msra.mxu0 %v296
    %312 = vmatpush.bf16.msra.mxu0 %v295
    %313 = vmatpush.bf16.msra.mxu0 %v294
    %314 = vmatpush.bf16.msra.mxu0 %v293
    %315 = vmatpush.bf16.msra.mxu0 %v292
    %316 = vmatmul.bf16.gmra.mxu0 %v239
    %v317 = vpop.f32.mrf.mxu0
    %v318 = vadd.f32 %v258, %v317
    %v319 = vpop.f32.mrf.mxu0
    %v320 = vadd.f32 %v258, %v319
    %321 = vdwg.mxu0
    %v322 = vadd.f32 %v84, %v318
    %v323 = vadd.f32 %v85, %v320
    %324 = vst.msk [vmem:[#allocation2] sm:$0xff] %vm66, %v322
    %325 = vst.msk [vmem:[#allocation2 + $0x8] sm:$0xff] %vm66, %v323
    // Predicated region
    $region42: #{block_forward.5} parent=1 // pred_check
      _
    $region43: #{block_forward.5} parent=1 // pred_check_branch
      %327 = sbr.rel (0) target = $region45
    $region44: #{block_forward.5} parent=1 // pred_region
      %329 = vsyncadd [#allocation3], 0
      %s330 = sshll.u32 [#allocation2], 4
      %s331 = int_to_ptr.vmem [resolvable:$true] %s330
      %s332 = sshll.u32 %s10, 4
      %s333 = int_to_ptr.hbm [resolvable:$true] %s332
      %338 = dma.vmem_to_hbm [thread:$0]  %s331, 256, %s333, [#allocation3], 128, 128, 8
    $region45: #{block_forward.5} parent=1 // pred_fallthru
      _
    // Predicated region
    $region46: #{block_forward.5} parent=1 // pred_check
      _
    $region47: #{block_forward.5} parent=1 // pred_check_branch
      %340 = sbr.rel (0) target = $region49
    $region48: #{block_forward.5} parent=1 // pred_region
      %342 = dma.done [#allocation3], 256
    $region49: #{block_forward.5} parent=1 // pred_fallthru
      _
    %343 = vsyncpa [#allocation3], 1

</llo_original>
